<compile_context>
chip_gen: v7x
topology: tpu7x:2x2x1
jax: 0.10.0
libtpu: 0.0.40
codegen_flags: <defaults>
</compile_context>

<pallas_src>
import jax
import jax.numpy as jnp
from jax.experimental import pallas as pl
from jax.experimental.pallas import tpu as pltpu

BN_EPS = 1e-5


def _round_up(x, m):
    return -(-x // m) * m


# ----------------------------- Pallas kernel -------------------------------
def gin_fused_kernel(a_ref, c_ref, h0_ref, etab_ref, w1_ref, w2_ref, vec_ref,
                     out_ref, h_scr):
    """One grid step == one GIN layer. h is carried in a bf16 VMEM scratch."""
    l = pl.program_id(0)
    last = pl.num_programs(0) - 1
    Dp = out_ref.shape[1]

    # Layer 0 consumes the (padded, bf16) atom embeddings; later layers read
    # the previous layer's activations from the resident bf16 scratch.
    @pl.when(l == 0)
    def _():
        h_scr[...] = h0_ref[...]

    h = h_scr[...]                                            # bf16 (N, Dp)

    # aggr[t] = sum_{edges s->t, incl self loops} (h[s] + edge_emb_e)
    #         = (A @ h)[t] + (C @ Etab_l)[t]
    # A / h are bf16 on the MXU with an f32 accumulator; the count-matrix
    # factorisation of the edge bias is exact (small integer counts).
    aggr = jnp.dot(a_ref[...], h, preferred_element_type=jnp.float32)
    aggr = aggr + jnp.dot(c_ref[...], etab_ref[0],
                          preferred_element_type=jnp.float32)

    # Packed per-layer vectors: row0 = b1 (2D-wide), row1 = gamma, row2 = beta.
    vec = vec_ref[0]                                          # (3, D2p) f32
    b1 = vec[0:1, :]                                          # (1, D2p)
    gamma = vec[1:2, :Dp]                                     # (1, Dp)
    beta = vec[2:3, :Dp]                                      # (1, Dp)

    # GINConv.mlp : Linear(D, 2D) -> ReLU -> Linear(2D, D)  (f32 on the MXU)
    h1 = jnp.maximum(
        jnp.dot(aggr, w1_ref[0], preferred_element_type=jnp.float32) + b1, 0.0)
    h2 = jnp.dot(h1, w2_ref[0], preferred_element_type=jnp.float32)
    # NOTE: second Linear's bias b2 intentionally omitted: under training-mode
    # BatchNorm it is exactly cancelled by the mean subtraction.

    # BatchNorm1d (training mode): two reductions + one fused scale/shift pass.
    mean = jnp.mean(h2, axis=0, keepdims=True)
    centered = h2 - mean
    var = jnp.mean(centered * centered, axis=0, keepdims=True)
    scale = gamma * jax.lax.rsqrt(var + BN_EPS)
    hn = centered * scale + beta

    # Inter-layer ReLU (skipped after the last layer); dropout(p=0) == identity.
    @pl.when(l != last)
    def _():
        h_scr[...] = jnp.maximum(hn, 0.0).astype(jnp.bfloat16)

    @pl.when(l == last)
    def _():
        out_ref[...] = hn                                     # only f32 store


# --------------------------- VMEM budgeting ---------------------------------
def _tile_bytes(r, c, itemsize):
    sub = {4: 8, 2: 16, 1: 32}[itemsize]
    return _round_up(r, sub) * _round_up(c, 128) * itemsize


def _vmem_capacity_bytes():
    try:
        return int(pltpu.get_tpu_info().vmem_capacity_bytes)
    except Exception:
        return 64 << 20              # conservative fallback (v7x per-TC VMEM)


def _vmem_limit_bytes(N, Dp, D2p, resident_buffers):
    resident = resident_buffers * (
        _tile_bytes(N, N, 2)          # A (bf16)
        + _tile_bytes(N, 8, 4)        # C counts (f32)
        + _tile_bytes(N, Dp, 2))      # h0 (bf16)
    out_buf = 2 * _tile_bytes(N, Dp, 4)     # output (default double-buffered)
    streamed = 2 * (                        # per-layer params, double-buffered
        _tile_bytes(8, Dp, 4) + _tile_bytes(Dp, D2p, 4)
        + _tile_bytes(D2p, Dp, 4) + _tile_bytes(3, D2p, 4))
    scratch = _tile_bytes(N, Dp, 2)         # carried h (bf16)
    live = 2 * _tile_bytes(N, D2p, 4) + 4 * _tile_bytes(N, Dp, 4)
    need = resident + out_buf + streamed + scratch + live + (2 << 20)
    cap = _vmem_capacity_bytes()
    # TODO(synk): if `need` exceeds `cap`, row-tile the dense A (with BN
    # partial-stat combining) rather than just raising the limit.
    return int(min(max(need, 8 << 20), cap - (4 << 20)))


# ------------------------------ pallas_call ----------------------------------
def _gin_fused_call(A, C, h0, Etab, W1, W2, vecs, *, single_buffer):
    L, _, Dp = Etab.shape
    N = A.shape[0]
    D2p = W1.shape[2]

    def resident(shape):
        imap = lambda l: (0,) * len(shape)
        if single_buffer:
            return pl.BlockSpec(shape, imap, pipeline_mode=pl.Buffered(1))
        return pl.BlockSpec(shape, imap)

    return pl.pallas_call(
        gin_fused_kernel,
        out_shape=jax.ShapeDtypeStruct((N, Dp), jnp.float32),
        grid_spec=pltpu.PrefetchScalarGridSpec(
            num_scalar_prefetch=0,
            grid=(L,),
            in_specs=[
                resident((N, N)),                                # A: resident
                resident((N, 8)),                                # C: resident
                resident((N, Dp)),                               # h0: resident
                pl.BlockSpec((1, 8, Dp), lambda l: (l, 0, 0)),   # Etab / layer
                pl.BlockSpec((1, Dp, D2p), lambda l: (l, 0, 0)), # W1 / layer
                pl.BlockSpec((1, D2p, Dp), lambda l: (l, 0, 0)), # W2 / layer
                pl.BlockSpec((1, 3, D2p), lambda l: (l, 0, 0)),  # b1|gamma|beta
            ],
            out_specs=pl.BlockSpec((N, Dp), lambda l: (0, 0)),   # final h only
            scratch_shapes=[pltpu.VMEM((N, Dp), jnp.bfloat16)],  # carried h
        ),
        compiler_params=pltpu.CompilerParams(
            dimension_semantics=("arbitrary",),                  # sequential layers
            vmem_limit_bytes=_vmem_limit_bytes(
                N, Dp, D2p, resident_buffers=1 if single_buffer else 2),
        ),
    )(A, C, h0, Etab, W1, W2, vecs)


def gin_fused(A, C, h0, Etab, W1, W2, vecs):
    try:
        return _gin_fused_call(A, C, h0, Etab, W1, W2, vecs, single_buffer=True)
    except Exception:
        # Fallback for JAX versions where BlockSpec.pipeline_mode / Buffered(1)
        # is not supported on top-level pallas_call specs.
        return _gin_fused_call(A, C, h0, Etab, W1, W2, vecs, single_buffer=False)


# ------------------------------ JAX glue ------------------------------------
def gin_forward(params, x, edge_index, edge_attr, num_layer):
    """Per-graph prep (dense A, count matrix C, stacked padded params) + the
    single fused Pallas kernel.

    NOTE: the scatter-based prep (A, C) is layer-invariant; at production
    scale it should be built once per graph and cached, not recomputed per
    forward call.
    """
    N = x.shape[0]
    D = params["x_emb1"].shape[1]
    Dp = _round_up(D, 128)
    D2p = _round_up(2 * D, 128)
    L = num_layer

    # atom embeddings: x_embedding1(x[:,0]) + x_embedding2(x[:,1]); zero-pad to
    # Dp lanes and carry as bf16 (kernel contracts it in bf16 anyway).
    h0 = params["x_emb1"][x[:, 0]] + params["x_emb2"][x[:, 1]]
    h0p = jnp.zeros((N, Dp), jnp.float32).at[:, :D].set(h0).astype(jnp.bfloat16)

    # add_self_loops: append (i, i) for every node, self-loop attr = (4, 0)
    loop = jnp.arange(N, dtype=edge_index.dtype)
    ei = jnp.concatenate([edge_index, jnp.stack([loop, loop], axis=0)], axis=1)
    self_attr = jnp.concatenate(
        [jnp.full((N, 1), 4, edge_attr.dtype),
         jnp.zeros((N, 1), edge_attr.dtype)], axis=1)
    ea = jnp.concatenate([edge_attr, self_attr], axis=0)
    src, tgt = ei[0], ei[1]

    # dense adjacency (incl. self loops): A[t, s] = #edges s -> t  (bf16 exact)
    A = jnp.zeros((N, N), jnp.float32).at[tgt, src].add(1.0).astype(jnp.bfloat16)

    # count matrix C[N, 8]: cols 0..4 = #incoming edges per bond type,
    # cols 5..7 = #incoming edges per bond direction (layer-invariant).
    C = jnp.zeros((N, 8), jnp.float32)
    C = C.at[tgt, ea[:, 0]].add(1.0)
    C = C.at[tgt, 5 + ea[:, 1]].add(1.0)

    # per-layer edge-embedding tables stacked & padded: [L, 8, Dp]
    Etab = jnp.zeros((L, 8, Dp), jnp.float32)
    # stacked, zero-padded per-layer weights: [L, Dp, D2p], [L, D2p, Dp]
    W1 = jnp.zeros((L, Dp, D2p), jnp.float32)
    W2 = jnp.zeros((L, D2p, Dp), jnp.float32)
    vecs = jnp.zeros((L, 3, D2p), jnp.float32)     # b1 | gamma | beta (padded)
    for i, lp in enumerate(params["layers"]):
        Etab = Etab.at[i, 0:5, :D].set(lp["edge_emb1"])
        Etab = Etab.at[i, 5:8, :D].set(lp["edge_emb2"])
        W1 = W1.at[i, :D, :2 * D].set(lp["w1"])
        W2 = W2.at[i, :2 * D, :D].set(lp["w2"])
        vecs = vecs.at[i, 0, :2 * D].set(lp["b1"][0])
        vecs = vecs.at[i, 1, :D].set(lp["gamma"][0])
        vecs = vecs.at[i, 2, :D].set(lp["beta"][0])

    out = gin_fused(A, C, h0p, Etab, W1, W2, vecs)
    return out[:, :D]                      # node_representation = h_list[-1]


# --------------------------- pure-JAX reference ------------------------------
def gin_reference(params, x, edge_index, edge_attr, num_layer):
    """f32 reference of the PyTorch forward (training-mode BN, b2 kept)."""
    N = x.shape[0]
    h = params["x_emb1"][x[:, 0]] + params["x_emb2"][x[:, 1]]
    loop = jnp.arange(N, dtype=edge_index.dtype)
    ei = jnp.concatenate([edge_index, jnp.stack([loop, loop], axis=0)], axis=1)
    self_attr = jnp.concatenate(
        [jnp.full((N, 1), 4, edge_attr.dtype),
         jnp.zeros((N, 1), edge_attr.dtype)], axis=1)
    ea = jnp.concatenate([edge_attr, self_attr], axis=0)
    src, tgt = ei[0], ei[1]
    for i, lp in enumerate(params["layers"]):
        emb = lp["edge_emb1"][ea[:, 0]] + lp["edge_emb2"][ea[:, 1]]
        aggr = jnp.zeros_like(h).at[tgt].add(h[src] + emb)
        h1 = jnp.maximum(aggr @ lp["w1"] + lp["b1"], 0.0)
        h2 = h1 @ lp["w2"] + lp["b2"]
        mean = h2.mean(axis=0, keepdims=True)
        var = ((h2 - mean) ** 2).mean(axis=0, keepdims=True)
        hn = (h2 - mean) / jnp.sqrt(var + BN_EPS) * lp["gamma"] + lp["beta"]
        h = hn if i == num_layer - 1 else jnp.maximum(hn, 0.0)
    return h


# --------------------------- parameter init ---------------------------------
def xavier_uniform(key, shape):
    fan_in, fan_out = shape[0], shape[1]
    bound = (6.0 / (fan_in + fan_out)) ** 0.5
    return jax.random.uniform(key, shape, jnp.float32, -bound, bound)


def linear_init(key, fan_in, fan_out):
    kw, kb = jax.random.split(key)
    bound = 1.0 / (fan_in ** 0.5)
    # stored as [in, out] so the kernel does h @ W + b
    w = jax.random.uniform(kw, (fan_in, fan_out), jnp.float32, -bound, bound)
    b = jax.random.uniform(kb, (1, fan_out), jnp.float32, -bound, bound)
    return w, b


def init_params(key, num_layer, emb_dim):
    keys = jax.random.split(key, 2 + num_layer)
    params = {
        "x_emb1": xavier_uniform(keys[0], (120, emb_dim)),
        "x_emb2": xavier_uniform(keys[1], (3, emb_dim)),
        "layers": [],
    }
    for layer in range(num_layer):
        k = jax.random.split(keys[2 + layer], 4)
        w1, b1 = linear_init(k[0], emb_dim, 2 * emb_dim)
        w2, b2 = linear_init(k[1], 2 * emb_dim, emb_dim)   # b2 cancelled by BN in-kernel
        params["layers"].append({
            "edge_emb1": xavier_uniform(k[2], (5, emb_dim)),
            "edge_emb2": xavier_uniform(k[3], (3, emb_dim)),
            "w1": w1, "b1": b1, "w2": w2, "b2": b2,
            "gamma": jnp.ones((1, emb_dim), jnp.float32),   # BatchNorm1d weight
            "beta": jnp.zeros((1, emb_dim), jnp.float32),   # BatchNorm1d bias
        })
    return params


# -------------------------------- main ---------------------------------------
if __name__ == "__main__":
    num_layer = 2
    emb_dim = 32
    N = 8        # nodes
    E = 12       # edges (before self loops)

    root = jax.random.PRNGKey(0)
    k_par, k_x0, k_x1, k_src, k_tgt, k_ea0, k_ea1 = jax.random.split(root, 7)

    params = init_params(k_par, num_layer, emb_dim)

    # node features: [N, 2] int indices (atom type, chirality)
    x = jnp.stack([
        jax.random.randint(k_x0, (N,), 0, 120),
        jax.random.randint(k_x1, (N,), 0, 3),
    ], axis=1).astype(jnp.int32)

    # edge_index [2, E], edge_attr [E, 2] (bond type in [0,4), bond dir in [0,3))
    edge_index = jnp.stack([
        jax.random.randint(k_src, (E,), 0, N),
        jax.random.randint(k_tgt, (E,), 0, N),
    ], axis=0).astype(jnp.int32)
    edge_attr = jnp.stack([
        jax.random.randint(k_ea0, (E,), 0, 4),
        jax.random.randint(k_ea1, (E,), 0, 3),
    ], axis=1).astype(jnp.int32)

    out = gin_forward(params, x, edge_index, edge_attr, num_layer)
    jax.block_until_ready(out)
    assert out.shape == (N, emb_dim) and out.dtype == jnp.float32

    # tolerance check vs the f32 reference (bf16 A@h carry drifts slightly)
    ref = gin_reference(params, x, edge_index, edge_attr, num_layer)
    max_err = float(jnp.max(jnp.abs(out - ref)))
    assert max_err < 0.15, f"mismatch vs f32 reference: max_err={max_err}"

    print("KERNEL_OK")
</pallas_src>

<mosaic_0001>
module attributes {stable_mosaic.version = 11 : i64} {
  func.func @gin_fused_kernel(%arg0: i32, %arg1: memref<8x8xbf16, #tpu.memory_space<vmem>>, %arg2: memref<8x8xf32, #tpu.memory_space<vmem>>, %arg3: memref<8x128xbf16, #tpu.memory_space<vmem>>, %arg4: memref<1x8x128xf32, #tpu.memory_space<vmem>>, %arg5: memref<1x128x128xf32, #tpu.memory_space<vmem>>, %arg6: memref<1x128x128xf32, #tpu.memory_space<vmem>>, %arg7: memref<1x3x128xf32, #tpu.memory_space<vmem>>, %arg8: memref<8x128xf32, #tpu.memory_space<vmem>>, %arg9: memref<8x128xbf16, #tpu.memory_space<vmem>>) attributes {dimension_semantics = [#tpu.dimension_semantics<arbitrary>], iteration_bounds = array<i64: 2>, scalar_prefetch = 0 : i64, scratch_operands = 1 : i64, tpu.core_type = #tpu.core_type<tc>, window_params = [{pipeline_mode = #tpu.pipeline_mode<synchronous>, transform_indices = @transform_0, window_bounds = array<i64: 8, 8>}, {pipeline_mode = #tpu.pipeline_mode<synchronous>, transform_indices = @transform_1, window_bounds = array<i64: 8, 8>}, {pipeline_mode = #tpu.pipeline_mode<synchronous>, transform_indices = @transform_2, window_bounds = array<i64: 8, 128>}, {transform_indices = @transform_3, window_bounds = array<i64: 1, 8, 128>}, {transform_indices = @transform_4, window_bounds = array<i64: 1, 128, 128>}, {transform_indices = @transform_5, window_bounds = array<i64: 1, 128, 128>}, {transform_indices = @transform_6, window_bounds = array<i64: 1, 3, 128>}, {pipeline_mode = #tpu.pipeline_mode<synchronous>, transform_indices = @transform_7, window_bounds = array<i64: 8, 128>}]} {
    %c0_i32 = arith.constant 0 : i32
    %0 = arith.cmpi eq, %arg0, %c0_i32 : i32
    %1 = arith.extui %0 : i1 to i32
    %c0_i32_0 = arith.constant 0 : i32
    %2 = arith.cmpi ne, %1, %c0_i32_0 : i32
    scf.if %2 {
      %c0_30 = arith.constant 0 : index
      %c0_31 = arith.constant 0 : index
      %51 = vector.load %arg3[%c0_30, %c0_31] : memref<8x128xbf16, #tpu.memory_space<vmem>>, vector<8x128xbf16>
      %c0_32 = arith.constant 0 : index
      %c0_33 = arith.constant 0 : index
      %52 = vector.load %arg9[%c0_32, %c0_33] : memref<8x128xbf16, #tpu.memory_space<vmem>>, vector<8x128xbf16>
      tpu.vector_store %arg9[%c0_32, %c0_33], %51 {strides = array<i32>} : memref<8x128xbf16, #tpu.memory_space<vmem>>, vector<8x128xbf16>,
    } else {
    }
    %c0 = arith.constant 0 : index
    %c0_1 = arith.constant 0 : index
    %3 = vector.load %arg9[%c0, %c0_1] : memref<8x128xbf16, #tpu.memory_space<vmem>>, vector<8x128xbf16>
    %c0_2 = arith.constant 0 : index
    %c0_3 = arith.constant 0 : index
    %4 = vector.load %arg1[%c0_2, %c0_3] : memref<8x8xbf16, #tpu.memory_space<vmem>>, vector<8x8xbf16>
    %cst = arith.constant dense<0.000000e+00> : vector<8x128xf32>
    %5 = tpu.matmul %4, %3, %cst {dimension_numbers = #tpu.dot_dimension_numbers<[1], [0], [0], [1], [0, 0, 1, 1], [], []>} : vector<8x8xbf16>, vector<8x128xbf16>, vector<8x128xf32> -> vector<8x128xf32>
    %c0_4 = arith.constant 0 : index
    %c0_5 = arith.constant 0 : index
    %6 = vector.load %arg2[%c0_4, %c0_5] : memref<8x8xf32, #tpu.memory_space<vmem>>, vector<8x8xf32>
    %c0_6 = arith.constant 0 : index
    %c0_7 = arith.constant 0 : index
    %c0_8 = arith.constant 0 : index
    %7 = vector.load %arg4[%c0_6, %c0_7, %c0_8] : memref<1x8x128xf32, #tpu.memory_space<vmem>>, vector<1x8x128xf32>
    %8 = vector.shape_cast %7 : vector<1x8x128xf32> to vector<8x128xf32>
    %cst_9 = arith.constant dense<0.000000e+00> : vector<8x128xf32>
    %9 = tpu.matmul %6, %8, %cst_9 {dimension_numbers = #tpu.dot_dimension_numbers<[1], [0], [0], [1], [0, 0, 1, 1], [], []>} : vector<8x8xf32>, vector<8x128xf32>, vector<8x128xf32> -> vector<8x128xf32>
    %10 = arith.addf %5, %9 : vector<8x128xf32>
    %c0_10 = arith.constant 0 : index
    %c0_11 = arith.constant 0 : index
    %c0_12 = arith.constant 0 : index
    %11 = vector.load %arg7[%c0_10, %c0_11, %c0_12] : memref<1x3x128xf32, #tpu.memory_space<vmem>>, vector<1x3x128xf32>
    %12 = vector.shape_cast %11 : vector<1x3x128xf32> to vector<3x128xf32>
    %13 = vector.extract_strided_slice %12 {offsets = [0, 0], sizes = [1, 128], strides = [1, 1]} : vector<3x128xf32> to vector<1x128xf32>
    %14 = vector.extract_strided_slice %12 {offsets = [1, 0], sizes = [1, 128], strides = [1, 1]} : vector<3x128xf32> to vector<1x128xf32>
    %15 = vector.extract_strided_slice %12 {offsets = [2, 0], sizes = [1, 128], strides = [1, 1]} : vector<3x128xf32> to vector<1x128xf32>
    %c0_13 = arith.constant 0 : index
    %c0_14 = arith.constant 0 : index
    %c0_15 = arith.constant 0 : index
    %16 = vector.load %arg5[%c0_13, %c0_14, %c0_15] : memref<1x128x128xf32, #tpu.memory_space<vmem>>, vector<1x128x128xf32>
    %17 = vector.shape_cast %16 : vector<1x128x128xf32> to vector<128x128xf32>
    %cst_16 = arith.constant dense<0.000000e+00> : vector<8x128xf32>
    %18 = tpu.matmul %10, %17, %cst_16 {dimension_numbers = #tpu.dot_dimension_numbers<[1], [0], [0], [1], [0, 0, 1, 1], [], []>} : vector<8x128xf32>, vector<128x128xf32>, vector<8x128xf32> -> vector<8x128xf32>
    %19 = vector.broadcast %13 : vector<1x128xf32> to vector<8x128xf32>
    %20 = arith.addf %18, %19 : vector<8x128xf32>
    %cst_17 = arith.constant 0.000000e+00 : f32
    %21 = vector.broadcast %cst_17 : f32 to vector<8x128xf32>
    %22 = arith.maximumf %20, %21 : vector<8x128xf32>
    %c0_18 = arith.constant 0 : index
    %c0_19 = arith.constant 0 : index
    %c0_20 = arith.constant 0 : index
    %23 = vector.load %arg6[%c0_18, %c0_19, %c0_20] : memref<1x128x128xf32, #tpu.memory_space<vmem>>, vector<1x128x128xf32>
    %24 = vector.shape_cast %23 : vector<1x128x128xf32> to vector<128x128xf32>
    %cst_21 = arith.constant dense<0.000000e+00> : vector<8x128xf32>
    %25 = tpu.matmul %22, %24, %cst_21 {dimension_numbers = #tpu.dot_dimension_numbers<[1], [0], [0], [1], [0, 0, 1, 1], [], []>} : vector<8x128xf32>, vector<128x128xf32>, vector<8x128xf32> -> vector<8x128xf32>
    %cst_22 = arith.constant dense<0.000000e+00> : vector<128xf32>
    %26 = vector.multi_reduction <add>, %25, %cst_22 [0] : vector<8x128xf32> to vector<128xf32>
    %27 = vector.shape_cast %26 : vector<128xf32> to vector<1x128xf32>
    %cst_23 = arith.constant 8.000000e+00 : f32
    %28 = vector.broadcast %cst_23 : f32 to vector<1x128xf32>
    %29 = arith.divf %27, %28 : vector<1x128xf32>
    %30 = vector.broadcast %29 : vector<1x128xf32> to vector<8x128xf32>
    %31 = arith.subf %25, %30 : vector<8x128xf32>
    %32 = arith.mulf %31, %31 : vector<8x128xf32>
    %cst_24 = arith.constant dense<0.000000e+00> : vector<128xf32>
    %33 = vector.multi_reduction <add>, %32, %cst_24 [0] : vector<8x128xf32> to vector<128xf32>
    %34 = vector.shape_cast %33 : vector<128xf32> to vector<1x128xf32>
    %cst_25 = arith.constant 8.000000e+00 : f32
    %35 = vector.broadcast %cst_25 : f32 to vector<1x128xf32>
    %36 = arith.divf %34, %35 : vector<1x128xf32>
    %cst_26 = arith.constant 9.99999974E-6 : f32
    %37 = vector.broadcast %cst_26 : f32 to vector<1x128xf32>
    %38 = arith.addf %36, %37 : vector<1x128xf32>
    %39 = math.rsqrt %38 : vector<1x128xf32>
    %40 = arith.mulf %14, %39 : vector<1x128xf32>
    %41 = vector.broadcast %40 : vector<1x128xf32> to vector<8x128xf32>
    %42 = arith.mulf %31, %41 : vector<8x128xf32>
    %43 = vector.broadcast %15 : vector<1x128xf32> to vector<8x128xf32>
    %44 = arith.addf %42, %43 : vector<8x128xf32>
    %c1_i32 = arith.constant 1 : i32
    %45 = arith.cmpi ne, %arg0, %c1_i32 : i32
    %46 = arith.extui %45 : i1 to i32
    %c0_i32_27 = arith.constant 0 : i32
    %47 = arith.cmpi ne, %46, %c0_i32_27 : i32
    scf.if %47 {
      %cst_30 = arith.constant 0.000000e+00 : f32
      %51 = vector.broadcast %cst_30 : f32 to vector<8x128xf32>
      %52 = arith.maximumf %44, %51 : vector<8x128xf32>
      %53 = arith.truncf %52 : vector<8x128xf32> to vector<8x128xbf16>
      %c0_31 = arith.constant 0 : index
      %c0_32 = arith.constant 0 : index
      %54 = vector.load %arg9[%c0_31, %c0_32] : memref<8x128xbf16, #tpu.memory_space<vmem>>, vector<8x128xbf16>
      tpu.vector_store %arg9[%c0_31, %c0_32], %53 {strides = array<i32>} : memref<8x128xbf16, #tpu.memory_space<vmem>>, vector<8x128xbf16>,
    } else {
    }
    %c1_i32_28 = arith.constant 1 : i32
    %48 = arith.cmpi eq, %arg0, %c1_i32_28 : i32
    %49 = arith.extui %48 : i1 to i32
    %c0_i32_29 = arith.constant 0 : i32
    %50 = arith.cmpi ne, %49, %c0_i32_29 : i32
    scf.if %50 {
      %c0_30 = arith.constant 0 : index
      %c0_31 = arith.constant 0 : index
      %51 = vector.load %arg8[%c0_30, %c0_31] : memref<8x128xf32, #tpu.memory_space<vmem>>, vector<8x128xf32>
      tpu.vector_store %arg8[%c0_30, %c0_31], %44 {strides = array<i32>} : memref<8x128xf32, #tpu.memory_space<vmem>>, vector<8x128xf32>,
    } else {
    }
    return
  }
  func.func @transform_0(%arg0: i32) -> (i32, i32) {
    %c0_i32 = arith.constant 0 : i32
    %c0_i32_0 = arith.constant 0 : i32
    %c0_i32_1 = arith.constant 0 : i32
    return %c0_i32, %c0_i32_0 : i32, i32
  }
  func.func @transform_1(%arg0: i32) -> (i32, i32) {
    %c0_i32 = arith.constant 0 : i32
    %c0_i32_0 = arith.constant 0 : i32
    %c0_i32_1 = arith.constant 0 : i32
    return %c0_i32, %c0_i32_0 : i32, i32
  }
  func.func @transform_2(%arg0: i32) -> (i32, i32) {
    %c0_i32 = arith.constant 0 : i32
    %c0_i32_0 = arith.constant 0 : i32
    %c0_i32_1 = arith.constant 0 : i32
    return %c0_i32, %c0_i32_0 : i32, i32
  }
  func.func @transform_3(%arg0: i32) -> (i32, i32, i32) {
    %c0_i32 = arith.constant 0 : i32
    %c0_i32_0 = arith.constant 0 : i32
    %c0_i32_1 = arith.constant 0 : i32
    return %arg0, %c0_i32, %c0_i32_0 : i32, i32, i32
  }
  func.func @transform_4(%arg0: i32) -> (i32, i32, i32) {
    %c0_i32 = arith.constant 0 : i32
    %c0_i32_0 = arith.constant 0 : i32
    %c0_i32_1 = arith.constant 0 : i32
    return %arg0, %c0_i32, %c0_i32_0 : i32, i32, i32
  }
  func.func @transform_5(%arg0: i32) -> (i32, i32, i32) {
    %c0_i32 = arith.constant 0 : i32
    %c0_i32_0 = arith.constant 0 : i32
    %c0_i32_1 = arith.constant 0 : i32
    return %arg0, %c0_i32, %c0_i32_0 : i32, i32, i32
  }
  func.func @transform_6(%arg0: i32) -> (i32, i32, i32) {
    %c0_i32 = arith.constant 0 : i32
    %c0_i32_0 = arith.constant 0 : i32
    %c0_i32_1 = arith.constant 0 : i32
    return %arg0, %c0_i32, %c0_i32_0 : i32, i32, i32
  }
  func.func @transform_7(%arg0: i32) -> (i32, i32) {
    %c0_i32 = arith.constant 0 : i32
    %c0_i32_0 = arith.constant 0 : i32
    %c0_i32_1 = arith.constant 0 : i32
    return %c0_i32, %c0_i32_0 : i32, i32
  }
}

module attributes {stable_mosaic.version = 11 : i64} {
  func.func @gin_fused_kernel(%arg0: i32, %arg1: memref<8x8xbf16, #tpu.memory_space<vmem>>, %arg2: memref<8x8xf32, #tpu.memory_space<vmem>>, %arg3: memref<8x128xbf16, #tpu.memory_space<vmem>>, %arg4: memref<1x8x128xf32, #tpu.memory_space<vmem>>, %arg5: memref<1x128x128xf32, #tpu.memory_space<vmem>>, %arg6: memref<1x128x128xf32, #tpu.memory_space<vmem>>, %arg7: memref<1x3x128xf32, #tpu.memory_space<vmem>>, %arg8: memref<8x128xf32, #tpu.memory_space<vmem>>, %arg9: memref<8x128xbf16, #tpu.memory_space<vmem>>) attributes {dimension_semantics = [#tpu.dimension_semantics<arbitrary>], iteration_bounds = array<i64: 2>, scalar_prefetch = 0 : i64, scratch_operands = 1 : i64, tpu.core_type = #tpu.core_type<tc>, window_params = [{pipeline_mode = #tpu.pipeline_mode<synchronous>, transform_indices = @transform_0, window_bounds = array<i64: 8, 8>}, {pipeline_mode = #tpu.pipeline_mode<synchronous>, transform_indices = @transform_1, window_bounds = array<i64: 8, 8>}, {pipeline_mode = #tpu.pipeline_mode<synchronous>, transform_indices = @transform_2, window_bounds = array<i64: 8, 128>}, {transform_indices = @transform_3, window_bounds = array<i64: 1, 8, 128>}, {transform_indices = @transform_4, window_bounds = array<i64: 1, 128, 128>}, {transform_indices = @transform_5, window_bounds = array<i64: 1, 128, 128>}, {transform_indices = @transform_6, window_bounds = array<i64: 1, 3, 128>}, {pipeline_mode = #tpu.pipeline_mode<synchronous>, transform_indices = @transform_7, window_bounds = array<i64: 8, 128>}]} {
    %c0_i32 = arith.constant 0 : i32
    %0 = arith.cmpi eq, %arg0, %c0_i32 : i32
    %1 = arith.extui %0 : i1 to i32
    %c0_i32_0 = arith.constant 0 : i32
    %2 = arith.cmpi ne, %1, %c0_i32_0 : i32
    scf.if %2 {
      %c0_30 = arith.constant 0 : index
      %c0_31 = arith.constant 0 : index
      %51 = vector.load %arg3[%c0_30, %c0_31] : memref<8x128xbf16, #tpu.memory_space<vmem>>, vector<8x128xbf16>
      %c0_32 = arith.constant 0 : index
      %c0_33 = arith.constant 0 : index
      %52 = vector.load %arg9[%c0_32, %c0_33] : memref<8x128xbf16, #tpu.memory_space<vmem>>, vector<8x128xbf16>
      tpu.vector_store %arg9[%c0_32, %c0_33], %51 {strides = array<i32>} : memref<8x128xbf16, #tpu.memory_space<vmem>>, vector<8x128xbf16>,
    } else {
    }
    %c0 = arith.constant 0 : index
    %c0_1 = arith.constant 0 : index
    %3 = vector.load %arg9[%c0, %c0_1] : memref<8x128xbf16, #tpu.memory_space<vmem>>, vector<8x128xbf16>
    %c0_2 = arith.constant 0 : index
    %c0_3 = arith.constant 0 : index
    %4 = vector.load %arg1[%c0_2, %c0_3] : memref<8x8xbf16, #tpu.memory_space<vmem>>, vector<8x8xbf16>
    %cst = arith.constant dense<0.000000e+00> : vector<8x128xf32>
    %5 = tpu.matmul %4, %3, %cst {dimension_numbers = #tpu.dot_dimension_numbers<[1], [0], [0], [1], [0, 0, 1, 1], [], []>} : vector<8x8xbf16>, vector<8x128xbf16>, vector<8x128xf32> -> vector<8x128xf32>
    %c0_4 = arith.constant 0 : index
    %c0_5 = arith.constant 0 : index
    %6 = vector.load %arg2[%c0_4, %c0_5] : memref<8x8xf32, #tpu.memory_space<vmem>>, vector<8x8xf32>
    %c0_6 = arith.constant 0 : index
    %c0_7 = arith.constant 0 : index
    %c0_8 = arith.constant 0 : index
    %7 = vector.load %arg4[%c0_6, %c0_7, %c0_8] : memref<1x8x128xf32, #tpu.memory_space<vmem>>, vector<1x8x128xf32>
    %8 = vector.shape_cast %7 : vector<1x8x128xf32> to vector<8x128xf32>
    %cst_9 = arith.constant dense<0.000000e+00> : vector<8x128xf32>
    %9 = tpu.matmul %6, %8, %cst_9 {dimension_numbers = #tpu.dot_dimension_numbers<[1], [0], [0], [1], [0, 0, 1, 1], [], []>} : vector<8x8xf32>, vector<8x128xf32>, vector<8x128xf32> -> vector<8x128xf32>
    %10 = arith.addf %5, %9 : vector<8x128xf32>
    %c0_10 = arith.constant 0 : index
    %c0_11 = arith.constant 0 : index
    %c0_12 = arith.constant 0 : index
    %11 = vector.load %arg7[%c0_10, %c0_11, %c0_12] : memref<1x3x128xf32, #tpu.memory_space<vmem>>, vector<1x3x128xf32>
    %12 = vector.shape_cast %11 : vector<1x3x128xf32> to vector<3x128xf32>
    %13 = vector.extract_strided_slice %12 {offsets = [0, 0], sizes = [1, 128], strides = [1, 1]} : vector<3x128xf32> to vector<1x128xf32>
    %14 = vector.extract_strided_slice %12 {offsets = [1, 0], sizes = [1, 128], strides = [1, 1]} : vector<3x128xf32> to vector<1x128xf32>
    %15 = vector.extract_strided_slice %12 {offsets = [2, 0], sizes = [1, 128], strides = [1, 1]} : vector<3x128xf32> to vector<1x128xf32>
    %c0_13 = arith.constant 0 : index
    %c0_14 = arith.constant 0 : index
    %c0_15 = arith.constant 0 : index
    %16 = vector.load %arg5[%c0_13, %c0_14, %c0_15] : memref<1x128x128xf32, #tpu.memory_space<vmem>>, vector<1x128x128xf32>
    %17 = vector.shape_cast %16 : vector<1x128x128xf32> to vector<128x128xf32>
    %cst_16 = arith.constant dense<0.000000e+00> : vector<8x128xf32>
    %18 = tpu.matmul %10, %17, %cst_16 {dimension_numbers = #tpu.dot_dimension_numbers<[1], [0], [0], [1], [0, 0, 1, 1], [], []>} : vector<8x128xf32>, vector<128x128xf32>, vector<8x128xf32> -> vector<8x128xf32>
    %19 = vector.broadcast %13 : vector<1x128xf32> to vector<8x128xf32>
    %20 = arith.addf %18, %19 : vector<8x128xf32>
    %cst_17 = arith.constant 0.000000e+00 : f32
    %21 = vector.broadcast %cst_17 : f32 to vector<8x128xf32>
    %22 = arith.maximumf %20, %21 : vector<8x128xf32>
    %c0_18 = arith.constant 0 : index
    %c0_19 = arith.constant 0 : index
    %c0_20 = arith.constant 0 : index
    %23 = vector.load %arg6[%c0_18, %c0_19, %c0_20] : memref<1x128x128xf32, #tpu.memory_space<vmem>>, vector<1x128x128xf32>
    %24 = vector.shape_cast %23 : vector<1x128x128xf32> to vector<128x128xf32>
    %cst_21 = arith.constant dense<0.000000e+00> : vector<8x128xf32>
    %25 = tpu.matmul %22, %24, %cst_21 {dimension_numbers = #tpu.dot_dimension_numbers<[1], [0], [0], [1], [0, 0, 1, 1], [], []>} : vector<8x128xf32>, vector<128x128xf32>, vector<8x128xf32> -> vector<8x128xf32>
    %cst_22 = arith.constant dense<0.000000e+00> : vector<128xf32>
    %26 = vector.multi_reduction <add>, %25, %cst_22 [0] : vector<8x128xf32> to vector<128xf32>
    %27 = vector.shape_cast %26 : vector<128xf32> to vector<1x128xf32>
    %cst_23 = arith.constant 8.000000e+00 : f32
    %28 = vector.broadcast %cst_23 : f32 to vector<1x128xf32>
    %29 = arith.divf %27, %28 : vector<1x128xf32>
    %30 = vector.broadcast %29 : vector<1x128xf32> to vector<8x128xf32>
    %31 = arith.subf %25, %30 : vector<8x128xf32>
    %32 = arith.mulf %31, %31 : vector<8x128xf32>
    %cst_24 = arith.constant dense<0.000000e+00> : vector<128xf32>
    %33 = vector.multi_reduction <add>, %32, %cst_24 [0] : vector<8x128xf32> to vector<128xf32>
    %34 = vector.shape_cast %33 : vector<128xf32> to vector<1x128xf32>
    %cst_25 = arith.constant 8.000000e+00 : f32
    %35 = vector.broadcast %cst_25 : f32 to vector<1x128xf32>
    %36 = arith.divf %34, %35 : vector<1x128xf32>
    %cst_26 = arith.constant 9.99999974E-6 : f32
    %37 = vector.broadcast %cst_26 : f32 to vector<1x128xf32>
    %38 = arith.addf %36, %37 : vector<1x128xf32>
    %39 = math.rsqrt %38 : vector<1x128xf32>
    %40 = arith.mulf %14, %39 : vector<1x128xf32>
    %41 = vector.broadcast %40 : vector<1x128xf32> to vector<8x128xf32>
    %42 = arith.mulf %31, %41 : vector<8x128xf32>
    %43 = vector.broadcast %15 : vector<1x128xf32> to vector<8x128xf32>
    %44 = arith.addf %42, %43 : vector<8x128xf32>
    %c1_i32 = arith.constant 1 : i32
    %45 = arith.cmpi ne, %arg0, %c1_i32 : i32
    %46 = arith.extui %45 : i1 to i32
    %c0_i32_27 = arith.constant 0 : i32
    %47 = arith.cmpi ne, %46, %c0_i32_27 : i32
    scf.if %47 {
      %cst_30 = arith.constant 0.000000e+00 : f32
      %51 = vector.broadcast %cst_30 : f32 to vector<8x128xf32>
      %52 = arith.maximumf %44, %51 : vector<8x128xf32>
      %53 = arith.truncf %52 : vector<8x128xf32> to vector<8x128xbf16>
      %c0_31 = arith.constant 0 : index
      %c0_32 = arith.constant 0 : index
      %54 = vector.load %arg9[%c0_31, %c0_32] : memref<8x128xbf16, #tpu.memory_space<vmem>>, vector<8x128xbf16>
      tpu.vector_store %arg9[%c0_31, %c0_32], %53 {strides = array<i32>} : memref<8x128xbf16, #tpu.memory_space<vmem>>, vector<8x128xbf16>,
    } else {
    }
    %c1_i32_28 = arith.constant 1 : i32
    %48 = arith.cmpi eq, %arg0, %c1_i32_28 : i32
    %49 = arith.extui %48 : i1 to i32
    %c0_i32_29 = arith.constant 0 : i32
    %50 = arith.cmpi ne, %49, %c0_i32_29 : i32
    scf.if %50 {
      %c0_30 = arith.constant 0 : index
      %c0_31 = arith.constant 0 : index
      %51 = vector.load %arg8[%c0_30, %c0_31] : memref<8x128xf32, #tpu.memory_space<vmem>>, vector<8x128xf32>
      tpu.vector_store %arg8[%c0_30, %c0_31], %44 {strides = array<i32>} : memref<8x128xf32, #tpu.memory_space<vmem>>, vector<8x128xf32>,
    } else {
    }
    return
  }
  func.func @transform_0(%arg0: i32) -> (i32, i32) {
    %c0_i32 = arith.constant 0 : i32
    %c0_i32_0 = arith.constant 0 : i32
    %c0_i32_1 = arith.constant 0 : i32
    return %c0_i32, %c0_i32_0 : i32, i32
  }
  func.func @transform_1(%arg0: i32) -> (i32, i32) {
    %c0_i32 = arith.constant 0 : i32
    %c0_i32_0 = arith.constant 0 : i32
    %c0_i32_1 = arith.constant 0 : i32
    return %c0_i32, %c0_i32_0 : i32, i32
  }
  func.func @transform_2(%arg0: i32) -> (i32, i32) {
    %c0_i32 = arith.constant 0 : i32
    %c0_i32_0 = arith.constant 0 : i32
    %c0_i32_1 = arith.constant 0 : i32
    return %c0_i32, %c0_i32_0 : i32, i32
  }
  func.func @transform_3(%arg0: i32) -> (i32, i32, i32) {
    %c0_i32 = arith.constant 0 : i32
    %c0_i32_0 = arith.constant 0 : i32
    %c0_i32_1 = arith.constant 0 : i32
    return %arg0, %c0_i32, %c0_i32_0 : i32, i32, i32
  }
  func.func @transform_4(%arg0: i32) -> (i32, i32, i32) {
    %c0_i32 = arith.constant 0 : i32
    %c0_i32_0 = arith.constant 0 : i32
    %c0_i32_1 = arith.constant 0 : i32
    return %arg0, %c0_i32, %c0_i32_0 : i32, i32, i32
  }
  func.func @transform_5(%arg0: i32) -> (i32, i32, i32) {
    %c0_i32 = arith.constant 0 : i32
    %c0_i32_0 = arith.constant 0 : i32
    %c0_i32_1 = arith.constant 0 : i32
    return %arg0, %c0_i32, %c0_i32_0 : i32, i32, i32
  }
  func.func @transform_6(%arg0: i32) -> (i32, i32, i32) {
    %c0_i32 = arith.constant 0 : i32
    %c0_i32_0 = arith.constant 0 : i32
    %c0_i32_1 = arith.constant 0 : i32
    return %arg0, %c0_i32, %c0_i32_0 : i32, i32, i32
  }
  func.func @transform_7(%arg0: i32) -> (i32, i32) {
    %c0_i32 = arith.constant 0 : i32
    %c0_i32_0 = arith.constant 0 : i32
    %c0_i32_1 = arith.constant 0 : i32
    return %c0_i32, %c0_i32_0 : i32, i32
  }
}

</mosaic_0001>

<llo_original>
// kernel: tpu_custom_call.1
$region0: #{tpu_custom_call.1}
  #allocation0 [shape = 'u32[]', space=smem, size = 0x4, offset = 0x4, fixed_abs, tag = 'smem constant byte address 0x4 - core index']
  #allocation1 [shape = 'u32[144,128]{1,0:T(1,128)}', space=vmem, size = 0x12000, scoped, tag = 'internal scratch']
  #allocation2 [shape = 'bf16[8,128]{1,0:T(8,128)(2,1)}', space=vmem, size = 0x800, scoped, tag = 'scratch operand']
  %s0 = inlined_call_operand.hbm [shape: bf16[8,8], index: 0, kind: input, shape index: {}]
  %s1 = inlined_call_operand.vmem [shape: f32[8,8], index: 1, kind: input, shape index: {}]
  %s2 = inlined_call_operand.hbm [shape: bf16[8,128], index: 2, kind: input, shape index: {}]
  %s3 = inlined_call_operand.vmem [shape: f32[2,8,128], index: 3, kind: input, shape index: {}]
  %s4 = inlined_call_operand.hbm [shape: f32[2,128,128], index: 4, kind: input, shape index: {}]
  %s5 = inlined_call_operand.hbm [shape: f32[2,128,128], index: 5, kind: input, shape index: {}]
  %s6 = inlined_call_operand.vmem [shape: f32[2,3,128], index: 6, kind: input, shape index: {}]
  %s7 = inlined_call_operand.hbm [shape: f32[8,128], index: 7, kind: output, shape index: {}]
  %s8 = sld [smem:[#allocation0]]
  $region89: #{tpu_custom_call.1} parent=0
    _
  %s10 = ssub.s32 1, %s8
  %s11 = scalar_select 0, %s10, %s8
  $region1: #{tpu_custom_call.1} parent=0
    #allocation3 [shape = 'u8[2048]{0}', space=vmem, size = 0x800, scoped, tag = 'input window, operand 0, single buffered']
    #allocation4 [shape = 's32[2]{0}', space=sflag, size = 0x8, scoped, tag = 'scoped memory for tpu_custom_call.1']
    #allocation5 [shape = 's32[2]{0}', space=sflag, size = 0x8, scoped, tag = 'scoped memory for tpu_custom_call.1']
    #allocation6 [shape = 'u8[2048]{0}', space=vmem, size = 0x800, scoped, tag = 'input window, operand 2, single buffered']
    #allocation7 [shape = 's32[1]{0}', space=sflag, size = 0x4, scoped, tag = 'scoped memory for tpu_custom_call.1']
    #allocation8 [shape = 'u8[131072]{0}', space=vmem, size = 0x20000, scoped, tag = 'input window, operand 4']
    #allocation9 [shape = 'u8[131072]{0}', space=vmem, size = 0x20000, scoped, tag = 'input window, operand 5']
    #allocation10 [shape = 'u8[4096]{0}', space=vmem, size = 0x1000, scoped, tag = 'output window, operand 0, single buffered']
    %12 = vsyncpa [#allocation4], 0
    %13 = vsyncpa [#allocation7], 0
    %14 = vsyncpa [#allocation5], 0
    loop: start=0, step=1, limit=4
    $region2: #{tpu_custom_call.1} parent=1 // loop_pre_header
      _
    $region3: #{tpu_custom_call.1} parent=1 // loop_header
      %s16 = sphi 0, %s20
      %p17 = scmp.ge.s32.totalorder %s16, 4
      %s24 = sphi 0, %s24
      %s26 = sphi 0, %s24
      %s27 = sphi 0, %s26
      %s41 = sphi 0, %s27
      %s45 = sphi 0, %s45
      %s47 = sphi 0, %s45
      %s48 = sphi 0, %s47
      %s62 = sphi 0, %s48
      %s66 = sphi 0, %s66
      %s68 = sphi 0, %s66
      %s69 = sphi 0, %s68
      %s83 = sphi 0, %s69
      %s89 = sphi 0, %s91
      %s92 = sphi 0, %s89
      %s93 = sphi 0, %s92
      %s109 = sphi 0, %s93
      %s115 = sphi 0, %s117
      %s118 = sphi 0, %s115
      %s119 = sphi 0, %s118
      %s135 = sphi 0, %s119
      %s141 = sphi 0, %s143
      %s144 = sphi 0, %s141
      %s145 = sphi 0, %s144
      %s161 = sphi 0, %s145
      %s167 = sphi 0, %s169
      %s170 = sphi 0, %s167
      %s171 = sphi 0, %s170
      %s187 = sphi 0, %s171
      %s191 = sphi 0, %s191
      %s193 = sphi 0, %s191
      %s194 = sphi 0, %s193
      %s208 = sphi 0, %s194
    $region4: #{tpu_custom_call.1} parent=1 // loop_header_branch
      %19 = sbr.rel (%p17) target = $region8
    $region5: #{tpu_custom_call.1} parent=1 // loop_body
      %s21 = ssub.s32 %s16, 1
      %s22 = ssub.s32 %s16, 2
      %s23 = sadd.s32 %s16, 1
      %s25 = sadd.s32 %s24, 1
      %p28 = scmp.eq.s32.totalorder %s16, 1
      %p29 = scmp.ne.s32.totalorder %s24, %s26
      %p30 = scmp.eq.s32.totalorder %s16, 0
      %p31 = por %p29, %p30
      %p32 = scmp.ne.s32.totalorder %s24, %s26
      %p33 = scmp.eq.s32.totalorder %s21, 1
      %p34 = por %p32, %p33
      %p35 = scmp.ne.s32.totalorder %s26, %s27
      %p36 = scmp.eq.s32.totalorder %s21, 0
      %p37 = por %p35, %p36
      %p38 = scmp.ne.s32.totalorder %s26, %s27
      %p39 = scmp.eq.s32.totalorder %s22, 1
      %p40 = por %p38, %p39
      %p42 = scmp.ne.s32.totalorder %s27, %s41
      %p43 = scmp.eq.s32.totalorder %s22, 0
      %p44 = por %p42, %p43
      %s46 = sadd.s32 %s45, 1
      %p49 = scmp.eq.s32.totalorder %s16, 1
      %p50 = scmp.ne.s32.totalorder %s45, %s47
      %p51 = scmp.eq.s32.totalorder %s16, 0
      %p52 = por %p50, %p51
      %p53 = scmp.ne.s32.totalorder %s45, %s47
      %p54 = scmp.eq.s32.totalorder %s21, 1
      %p55 = por %p53, %p54
      %p56 = scmp.ne.s32.totalorder %s47, %s48
      %p57 = scmp.eq.s32.totalorder %s21, 0
      %p58 = por %p56, %p57
      %p59 = scmp.ne.s32.totalorder %s47, %s48
      %p60 = scmp.eq.s32.totalorder %s22, 1
      %p61 = por %p59, %p60
      %p63 = scmp.ne.s32.totalorder %s48, %s62
      %p64 = scmp.eq.s32.totalorder %s22, 0
      %p65 = por %p63, %p64
      %s67 = sadd.s32 %s66, 1
      %p70 = scmp.eq.s32.totalorder %s16, 1
      %p71 = scmp.ne.s32.totalorder %s66, %s68
      %p72 = scmp.eq.s32.totalorder %s16, 0
      %p73 = por %p71, %p72
      %p74 = scmp.ne.s32.totalorder %s66, %s68
      %p75 = scmp.eq.s32.totalorder %s21, 1
      %p76 = por %p74, %p75
      %p77 = scmp.ne.s32.totalorder %s68, %s69
      %p78 = scmp.eq.s32.totalorder %s21, 0
      %p79 = por %p77, %p78
      %p80 = scmp.ne.s32.totalorder %s68, %s69
      %p81 = scmp.eq.s32.totalorder %s22, 1
      %p82 = por %p80, %p81
      %p84 = scmp.ne.s32.totalorder %s69, %s83
      %p85 = scmp.eq.s32.totalorder %s22, 0
      %p86 = por %p84, %p85
      %s87 = ssub.s32 %s16, %s23
      %p88 = scmp.eq.s32.totalorder %s87, 0
      %s90 = sadd.s32 %s89, 1
      %s91 = scalar_select %p88, %s89, %s90
      %p94 = pneg %p88
      %p95 = scmp.eq.s32.totalorder %s16, 1
      %p96 = por %p94, %p95
      %p97 = scmp.ne.s32.totalorder %s89, %s92
      %p98 = scmp.eq.s32.totalorder %s16, 0
      %p99 = por %p97, %p98
      %p100 = scmp.ne.s32.totalorder %s89, %s92
      %p101 = scmp.eq.s32.totalorder %s21, 1
      %p102 = por %p100, %p101
      %p103 = scmp.ne.s32.totalorder %s92, %s93
      %p104 = scmp.eq.s32.totalorder %s21, 0
      %p105 = por %p103, %p104
      %p106 = scmp.ne.s32.totalorder %s92, %s93
      %p107 = scmp.eq.s32.totalorder %s22, 1
      %p108 = por %p106, %p107
      %p110 = scmp.ne.s32.totalorder %s93, %s109
      %p111 = scmp.eq.s32.totalorder %s22, 0
      %p112 = por %p110, %p111
      %s113 = ssub.s32 %s16, %s23
      %p114 = scmp.eq.s32.totalorder %s113, 0
      %s116 = sadd.s32 %s115, 1
      %s117 = scalar_select %p114, %s115, %s116
      %p120 = pneg %p114
      %p121 = scmp.eq.s32.totalorder %s16, 1
      %p122 = por %p120, %p121
      %p123 = scmp.ne.s32.totalorder %s115, %s118
      %p124 = scmp.eq.s32.totalorder %s16, 0
      %p125 = por %p123, %p124
      %p126 = scmp.ne.s32.totalorder %s115, %s118
      %p127 = scmp.eq.s32.totalorder %s21, 1
      %p128 = por %p126, %p127
      %p129 = scmp.ne.s32.totalorder %s118, %s119
      %p130 = scmp.eq.s32.totalorder %s21, 0
      %p131 = por %p129, %p130
      %p132 = scmp.ne.s32.totalorder %s118, %s119
      %p133 = scmp.eq.s32.totalorder %s22, 1
      %p134 = por %p132, %p133
      %p136 = scmp.ne.s32.totalorder %s119, %s135
      %p137 = scmp.eq.s32.totalorder %s22, 0
      %p138 = por %p136, %p137
      %s139 = ssub.s32 %s16, %s23
      %p140 = scmp.eq.s32.totalorder %s139, 0
      %s142 = sadd.s32 %s141, 1
      %s143 = scalar_select %p140, %s141, %s142
      %p146 = pneg %p140
      %p147 = scmp.eq.s32.totalorder %s16, 1
      %p148 = por %p146, %p147
      %p149 = scmp.ne.s32.totalorder %s141, %s144
      %p150 = scmp.eq.s32.totalorder %s16, 0
      %p151 = por %p149, %p150
      %p152 = scmp.ne.s32.totalorder %s141, %s144
      %p153 = scmp.eq.s32.totalorder %s21, 1
      %p154 = por %p152, %p153
      %p155 = scmp.ne.s32.totalorder %s144, %s145
      %p156 = scmp.eq.s32.totalorder %s21, 0
      %p157 = por %p155, %p156
      %p158 = scmp.ne.s32.totalorder %s144, %s145
      %p159 = scmp.eq.s32.totalorder %s22, 1
      %p160 = por %p158, %p159
      %p162 = scmp.ne.s32.totalorder %s145, %s161
      %p163 = scmp.eq.s32.totalorder %s22, 0
      %p164 = por %p162, %p163
      %s165 = ssub.s32 %s16, %s23
      %p166 = scmp.eq.s32.totalorder %s165, 0
      %s168 = sadd.s32 %s167, 1
      %s169 = scalar_select %p166, %s167, %s168
      %p172 = pneg %p166
      %p173 = scmp.eq.s32.totalorder %s16, 1
      %p174 = por %p172, %p173
      %p175 = scmp.ne.s32.totalorder %s167, %s170
      %p176 = scmp.eq.s32.totalorder %s16, 0
      %p177 = por %p175, %p176
      %p178 = scmp.ne.s32.totalorder %s167, %s170
      %p179 = scmp.eq.s32.totalorder %s21, 1
      %p180 = por %p178, %p179
      %p181 = scmp.ne.s32.totalorder %s170, %s171
      %p182 = scmp.eq.s32.totalorder %s21, 0
      %p183 = por %p181, %p182
      %p184 = scmp.ne.s32.totalorder %s170, %s171
      %p185 = scmp.eq.s32.totalorder %s22, 1
      %p186 = por %p184, %p185
      %p188 = scmp.ne.s32.totalorder %s171, %s187
      %p189 = scmp.eq.s32.totalorder %s22, 0
      %p190 = por %p188, %p189
      %s192 = sadd.s32 %s191, 1
      %p195 = scmp.eq.s32.totalorder %s16, 1
      %p196 = scmp.ne.s32.totalorder %s191, %s193
      %p197 = scmp.eq.s32.totalorder %s16, 0
      %p198 = por %p196, %p197
      %p199 = scmp.ne.s32.totalorder %s191, %s193
      %p200 = scmp.eq.s32.totalorder %s21, 1
      %p201 = por %p199, %p200
      %p202 = scmp.ne.s32.totalorder %s193, %s194
      %p203 = scmp.eq.s32.totalorder %s21, 0
      %p204 = por %p202, %p203
      %p205 = scmp.ne.s32.totalorder %s193, %s194
      %p206 = scmp.eq.s32.totalorder %s22, 1
      %p207 = por %p205, %p206
      %p209 = scmp.ne.s32.totalorder %s194, %s208
      %p210 = scmp.eq.s32.totalorder %s22, 0
      %p211 = por %p209, %p210
      %p212 = scmp.le.s32.totalorder 1, %s16
      %p213 = scmp.lt.s32.totalorder %s16, 3
      %p214 = pnand %p212, %p213
      %p215 = pneg %p214
      // Predicated region
      $region9: #{tpu_custom_call.1} parent=5 // pred_check
        _
      $region10: #{tpu_custom_call.1} parent=5 // pred_check_branch
        %217 = sbr.rel (%p214) target = $region12
      $region11: #{tpu_custom_call.1} parent=5 // pred_region
        %s218 = ssub.s32 %s16, 1
        // Predicated region
        $region13: #{tpu_custom_call.1} parent=11 // pred_check
          %p219 = pneg %p37
        $region14: #{tpu_custom_call.1} parent=11 // pred_check_branch
          %221 = sbr.rel (%p219) target = $region16
        $region15: #{tpu_custom_call.1} parent=11 // pred_region
          %s223 = ssub.s32 64, 64
          %224 = vsyncadd [#allocation4], %s223
          %s226 = sshll.u32 [#allocation3], 4
          %s227 = int_to_ptr.vmem [resolvable:$true] %s226
          %229 = dma.hbm_to_vmem [thread:$0]  %s0, 64, %s227, [#allocation4]
        $region16: #{tpu_custom_call.1} parent=11 // pred_fallthru
          _
        // Predicated region
        $region17: #{tpu_custom_call.1} parent=11 // pred_check
          %p230 = pneg %p58
        $region18: #{tpu_custom_call.1} parent=11 // pred_check_branch
          %232 = sbr.rel (%p230) target = $region20
        $region19: #{tpu_custom_call.1} parent=11 // pred_region
          _
        $region20: #{tpu_custom_call.1} parent=11 // pred_fallthru
          _
        // Predicated region
        $region21: #{tpu_custom_call.1} parent=11 // pred_check
          %p233 = pneg %p79
        $region22: #{tpu_custom_call.1} parent=11 // pred_check_branch
          %235 = sbr.rel (%p233) target = $region24
        $region23: #{tpu_custom_call.1} parent=11 // pred_region
          %s237 = ssub.s32 64, 64
          %238 = vsyncadd [#allocation7], %s237
          %s240 = sshll.u32 [#allocation6], 4
          %s241 = int_to_ptr.vmem [resolvable:$true] %s240
          %243 = dma.hbm_to_vmem [thread:$0]  %s2, 64, %s241, [#allocation7]
        $region24: #{tpu_custom_call.1} parent=11 // pred_fallthru
          _
      $region12: #{tpu_custom_call.1} parent=5 // pred_fallthru
        _
      %p244 = scmp.lt.s32.totalorder %s16, 2
      // Predicated region
      $region25: #{tpu_custom_call.1} parent=5 // pred_check
        %p245 = pneg %p244
      $region26: #{tpu_custom_call.1} parent=5 // pred_check_branch
        %247 = sbr.rel (%p245) target = $region28
      $region27: #{tpu_custom_call.1} parent=5 // pred_region
        // Predicated region
        $region29: #{tpu_custom_call.1} parent=27 // pred_check
          %p248 = pneg %p99
        $region30: #{tpu_custom_call.1} parent=27 // pred_check_branch
          %250 = sbr.rel (%p248) target = $region32
        $region31: #{tpu_custom_call.1} parent=27 // pred_region
          %p251 = scmp.lt.s32.totalorder %s16, 1
          %s252 = scalar_select %p251, %s16, 1
          %s253 = smul.addr %s252, 8
          %s254 = scalar_lea.vmem %s3, %s253
        $region32: #{tpu_custom_call.1} parent=27 // pred_fallthru
          _
        // Predicated region
        $region33: #{tpu_custom_call.1} parent=27 // pred_check
          %p255 = pneg %p125
        $region34: #{tpu_custom_call.1} parent=27 // pred_check_branch
          %257 = sbr.rel (%p255) target = $region36
        $region35: #{tpu_custom_call.1} parent=27 // pred_region
          %s258 = sand.u32 %s16, 1
          %s259 = scalar_lea.sflag [#allocation4], %s258
          %s260 = sand.u32 %s115, 1
          %s261 = smul.addr %s260, 128
          %s262 = scalar_lea.vmem [#allocation8], %s261
          %s264 = ssub.s32 2048, 2048
          %265 = vsyncadd %s259, %s264
          %s266 = smul.addr %s16, 16
          %s267 = smul.addr %s266, 128
          %s268 = scalar_lea.hbm %s4, %s267
          %s269 = sshll.u32 %s262, 4
          %s270 = int_to_ptr.vmem [resolvable:$true] %s269
          %275 = dma.hbm_to_vmem [thread:$0]  %s268, 2048, %s270, %s259, 128, 128, 8
        $region36: #{tpu_custom_call.1} parent=27 // pred_fallthru
          _
        // Predicated region
        $region37: #{tpu_custom_call.1} parent=27 // pred_check
          %p276 = pneg %p151
        $region38: #{tpu_custom_call.1} parent=27 // pred_check_branch
          %278 = sbr.rel (%p276) target = $region40
        $region39: #{tpu_custom_call.1} parent=27 // pred_region
          %s279 = sand.u32 %s16, 1
          %s280 = scalar_lea.sflag [#allocation4], %s279
          %s281 = sand.u32 %s141, 1
          %s282 = smul.addr %s281, 128
          %s283 = scalar_lea.vmem [#allocation9], %s282
          %s285 = ssub.s32 2048, 2048
          %286 = vsyncadd %s280, %s285
          %s287 = smul.addr %s16, 16
          %s288 = smul.addr %s287, 128
          %s289 = scalar_lea.hbm %s5, %s288
          %s290 = sshll.u32 %s283, 4
          %s291 = int_to_ptr.vmem [resolvable:$true] %s290
          %296 = dma.hbm_to_vmem [thread:$0]  %s289, 2048, %s291, %s280, 128, 128, 8
        $region40: #{tpu_custom_call.1} parent=27 // pred_fallthru
          _
        // Predicated region
        $region41: #{tpu_custom_call.1} parent=27 // pred_check
          %p297 = pneg %p177
        $region42: #{tpu_custom_call.1} parent=27 // pred_check_branch
          %299 = sbr.rel (%p297) target = $region44
        $region43: #{tpu_custom_call.1} parent=27 // pred_region
          %p300 = scmp.lt.s32.totalorder %s16, 1
          %s301 = scalar_select %p300, %s16, 1
          %s302 = smul.addr %s301, 4
          %s303 = scalar_lea.vmem %s6, %s302
        $region44: #{tpu_custom_call.1} parent=27 // pred_fallthru
          _
      $region28: #{tpu_custom_call.1} parent=5 // pred_fallthru
        _
      %p304 = scmp.le.s32.totalorder 1, %s16
      %p305 = scmp.lt.s32.totalorder %s16, 3
      %p306 = pnand %p304, %p305
      %p307 = pneg %p306
      // Predicated region
      $region45: #{tpu_custom_call.1} parent=5 // pred_check
        _
      $region46: #{tpu_custom_call.1} parent=5 // pred_check_branch
        %309 = sbr.rel (%p306) target = $region48
      $region47: #{tpu_custom_call.1} parent=5 // pred_region
        %s310 = ssub.s32 %s16, 1
        // Predicated region
        $region49: #{tpu_custom_call.1} parent=47 // pred_check
          %p311 = pneg %p37
        $region50: #{tpu_custom_call.1} parent=47 // pred_check_branch
          %313 = sbr.rel (%p311) target = $region52
        $region51: #{tpu_custom_call.1} parent=47 // pred_region
          %314 = dma.done [#allocation4], 64
        $region52: #{tpu_custom_call.1} parent=47 // pred_fallthru
          _
        // Predicated region
        $region53: #{tpu_custom_call.1} parent=47 // pred_check
          %p315 = pneg %p79
        $region54: #{tpu_custom_call.1} parent=47 // pred_check_branch
          %317 = sbr.rel (%p315) target = $region56
        $region55: #{tpu_custom_call.1} parent=47 // pred_region
          %318 = dma.done [#allocation7], 64
        $region56: #{tpu_custom_call.1} parent=47 // pred_fallthru
          _
        %s319 = sand.u32 %s21, 1
        %s320 = scalar_lea.sflag [#allocation4], %s319
        %s321 = sand.u32 %s118, 1
        %s322 = smul.addr %s321, 128
        %s323 = scalar_lea.vmem [#allocation8], %s322
        // Predicated region
        $region57: #{tpu_custom_call.1} parent=47 // pred_check
          %p324 = pneg %p131
        $region58: #{tpu_custom_call.1} parent=47 // pred_check_branch
          %326 = sbr.rel (%p324) target = $region60
        $region59: #{tpu_custom_call.1} parent=47 // pred_region
          %327 = dma.done %s320, 2048
        $region60: #{tpu_custom_call.1} parent=47 // pred_fallthru
          _
        %s328 = sand.u32 %s21, 1
        %s329 = scalar_lea.sflag [#allocation4], %s328
        %s330 = sand.u32 %s144, 1
        %s331 = smul.addr %s330, 128
        %s332 = scalar_lea.vmem [#allocation9], %s331
        // Predicated region
        $region61: #{tpu_custom_call.1} parent=47 // pred_check
          %p333 = pneg %p157
        $region62: #{tpu_custom_call.1} parent=47 // pred_check_branch
          %335 = sbr.rel (%p333) target = $region64
        $region63: #{tpu_custom_call.1} parent=47 // pred_region
          %336 = dma.done %s329, 2048
        $region64: #{tpu_custom_call.1} parent=47 // pred_fallthru
          _
        %p337 = pneg %p37
        %p338 = pneg %p34
        %p339 = pneg %p58
        %p340 = pneg %p55
        %p341 = pneg %p79
        %p342 = pneg %p76
        %p343 = scmp.lt.s32.totalorder %s21, 1
        %s344 = scalar_select %p343, %s21, 1
        %s345 = smul.addr %s344, 8
        %s346 = scalar_lea.vmem %s3, %s345
        %p347 = pneg %p105
        %p348 = pneg %p102
        %s349 = sand.u32 %s21, 1
        %s350 = scalar_lea.sflag [#allocation4], %s349
        %s351 = sand.u32 %s118, 1
        %s352 = smul.addr %s351, 128
        %s353 = scalar_lea.vmem [#allocation8], %s352
        %p354 = pneg %p131
        %p355 = pneg %p128
        %s356 = sand.u32 %s21, 1
        %s357 = scalar_lea.sflag [#allocation4], %s356
        %s358 = sand.u32 %s144, 1
        %s359 = smul.addr %s358, 128
        %s360 = scalar_lea.vmem [#allocation9], %s359
        %p361 = pneg %p157
        %p362 = pneg %p154
        %p363 = scmp.lt.s32.totalorder %s21, 1
        %s364 = scalar_select %p363, %s21, 1
        %s365 = smul.addr %s364, 4
        %s366 = scalar_lea.vmem %s6, %s365
        %p367 = pneg %p183
        %p368 = pneg %p180
        %p369 = pneg %p204
        %p370 = pneg %p201
        %p371 = scmp.lt.s32.totalorder %s21, 1
        %s372 = scalar_select %p371, %s21, 1
        %s373 = smul.addr %s372, 8
        %s374 = scalar_lea.vmem %s3, %s373
        %p375 = scmp.lt.s32.totalorder %s21, 1
        %s376 = scalar_select %p375, %s21, 1
        %s377 = smul.addr %s376, 4
        %s378 = scalar_lea.vmem %s6, %s377
        %p380 = scmp.eq.s32.totalorder %s21, 0
        // Predicated region
        $region65: #{tpu_custom_call.1} parent=47 // pred_check
          %p381 = pneg %p380
        $region66: #{tpu_custom_call.1} parent=47 // pred_check_branch
          %383 = sbr.rel (%p381) target = $region68
        $region67: #{tpu_custom_call.1} parent=47 // pred_region
          %v384 = vld [vmem:[#allocation6] sm:$0xf]
          %385 = vst [vmem:[#allocation2] sm:$0xf] %v384
        $region68: #{tpu_custom_call.1} parent=47 // pred_fallthru
          _
        %v386 = vld [vmem:[#allocation2] sm:$0xf]
        %v387 = vld [vmem:[#allocation3] sm:$0xf]
        %v388 = vld [vmem:[%s1] sm:$0xff]
        %v389 = vld [vmem:[%s374] sm:$0xff]
        %vm390 = vcmask 64512
        %v392 = vsel %vm390, %v388, 0
        %394 = vmatprep.subr.mxu0 0.0
        %395 = vmatpush1.msra.mxu0 %v389
        %396 = vmatprep.subr.mxu0 0.0
        %397 = vmatpush1.msra.mxu0 0.0
        %398 = vmatprep.subr.mxu0 0.0
        %399 = vmatpush1.msra.mxu0 0.0
        %400 = vmatprep.subr.mxu0 0.0
        %401 = vmatpush1.msra.mxu0 0.0
        %402 = vmatprep.subr.mxu0 0.0
        %403 = vmatpush1.msra.mxu0 0.0
        %404 = vmatprep.subr.mxu0 0.0
        %405 = vmatpush1.msra.mxu0 0.0
        %406 = vmatprep.subr.mxu0 0.0
        %407 = vmatpush1.msra.mxu0 0.0
        %408 = vmatprep.subr.mxu0 0.0
        %409 = vmatpush1.msra.mxu0 0.0
        %410 = vmatprep.subr.mxu0 0.0
        %411 = vmatpush1.msra.mxu0 0.0
        %412 = vmatprep.subr.mxu0 0.0
        %413 = vmatpush1.msra.mxu0 0.0
        %414 = vmatprep.subr.mxu0 0.0
        %415 = vmatpush1.msra.mxu0 0.0
        %416 = vmatprep.subr.mxu0 0.0
        %417 = vmatpush1.msra.mxu0 0.0
        %418 = vmatprep.subr.mxu0 0.0
        %419 = vmatpush1.msra.mxu0 0.0
        %420 = vmatprep.subr.mxu0 0.0
        %421 = vmatpush1.msra.mxu0 0.0
        %422 = vmatprep.subr.mxu0 0.0
        %423 = vmatpush1.msra.mxu0 0.0
        %424 = vmatprep.subr.mxu0 0.0
        %425 = vmatpush1.msra.mxu0 0.0
        %426 = vmatprep.subr.mxu0 0.0
        %427 = vmatpush1.msra.mxu0 0.0
        %428 = vmatprep.subr.mxu0 0.0
        %429 = vmatpush1.msra.mxu0 0.0
        %430 = vmatprep.subr.mxu0 0.0
        %431 = vmatpush1.msra.mxu0 0.0
        %432 = vmatprep.subr.mxu0 0.0
        %433 = vmatpush1.msra.mxu0 0.0
        %434 = vmatprep.subr.mxu0 0.0
        %435 = vmatpush1.msra.mxu0 0.0
        %436 = vmatprep.subr.mxu0 0.0
        %437 = vmatpush1.msra.mxu0 0.0
        %438 = vmatprep.subr.mxu0 0.0
        %439 = vmatpush1.msra.mxu0 0.0
        %440 = vmatprep.subr.mxu0 0.0
        %441 = vmatpush1.msra.mxu0 0.0
        %442 = vmatprep.subr.mxu0 0.0
        %443 = vmatpush1.msra.mxu0 0.0
        %444 = vmatprep.subr.mxu0 0.0
        %445 = vmatpush1.msra.mxu0 0.0
        %446 = vmatprep.subr.mxu0 0.0
        %447 = vmatpush1.msra.mxu0 0.0
        %448 = vmatprep.subr.mxu0 0.0
        %449 = vmatpush1.msra.mxu0 0.0
        %450 = vmatprep.subr.mxu0 0.0
        %451 = vmatpush1.msra.mxu0 0.0
        %452 = vmatprep.subr.mxu0 0.0
        %453 = vmatpush1.msra.mxu0 0.0
        %454 = vmatprep.subr.mxu0 0.0
        %455 = vmatpush1.msra.mxu0 0.0
        %456 = vmatprep.subr.mxu0 0.0
        %457 = vmatpush1.msra.mxu0 0.0
        %458 = vmatprep.mubr.f32.mxu0 0.0
        %459 = vmatmul.mubr.f32.gmra.mrb[0].mxu0 %v392
        %v460 = vpop.f32.mrb[0].mxu0
        %v461 = vadd.f32 0.0, %v460
        %v462 = vpop.f32.mrb[0].mxu0
        %463 = vdwg.mxu0
        %v465 = vsel %vm390, %v387, 0
        %vm467 = vcmask 1043456
        %v469 = vsel %vm467, %v386, 0
        %471 = vmatprep.subr.bf16.mxu0 0
        %472 = vmatpush1.bf16.msra.mxu0 %v469
        %473 = vmatprep.subr.bf16.mxu0 0
        %474 = vmatpush1.bf16.msra.mxu0 0
        %475 = vmatprep.subr.bf16.mxu0 0
        %476 = vmatpush1.bf16.msra.mxu0 0
        %477 = vmatprep.subr.bf16.mxu0 0
        %478 = vmatpush1.bf16.msra.mxu0 0
        %479 = vmatprep.subr.bf16.mxu0 0
        %480 = vmatpush1.bf16.msra.mxu0 0
        %481 = vmatprep.subr.bf16.mxu0 0
        %482 = vmatpush1.bf16.msra.mxu0 0
        %483 = vmatprep.subr.bf16.mxu0 0
        %484 = vmatpush1.bf16.msra.mxu0 0
        %485 = vmatprep.subr.bf16.mxu0 0
        %486 = vmatpush1.bf16.msra.mxu0 0
        %487 = vmatprep.subr.bf16.mxu0 0
        %488 = vmatpush1.bf16.msra.mxu0 0
        %489 = vmatprep.subr.bf16.mxu0 0
        %490 = vmatpush1.bf16.msra.mxu0 0
        %491 = vmatprep.subr.bf16.mxu0 0
        %492 = vmatpush1.bf16.msra.mxu0 0
        %493 = vmatprep.subr.bf16.mxu0 0
        %494 = vmatpush1.bf16.msra.mxu0 0
        %495 = vmatprep.subr.bf16.mxu0 0
        %496 = vmatpush1.bf16.msra.mxu0 0
        %497 = vmatprep.subr.bf16.mxu0 0
        %498 = vmatpush1.bf16.msra.mxu0 0
        %499 = vmatprep.subr.bf16.mxu0 0
        %500 = vmatpush1.bf16.msra.mxu0 0
        %501 = vmatprep.subr.bf16.mxu0 0
        %502 = vmatpush1.bf16.msra.mxu0 0
        %503 = vmatprep.mubr.bf16.mxu0 0
        %504 = vmatmul.mubr.bf16.gmra.mrb[0].mxu0 %v465
        %v505 = vpop.f32.mrb[0].mxu0
        %v506 = vadd.f32 %v461, %v505
        %v507 = vpop.f32.mrb[0].mxu0
        %v508 = vpop.f32.mrb[0].mxu0
        %v509 = vpop.f32.mrb[0].mxu0
        %510 = vdwg.mxu0
        %v511 = vld [vmem:[%s378] sm:$0x7]
        %v512 = vld [vmem:[%s323] sm:$0xff]
        %v513 = vld [vmem:[%s323 + $0x8] sm:$0xff]
        %v514 = vld [vmem:[%s323 + $0x10] sm:$0xff]
        %v515 = vld [vmem:[%s323 + $0x18] sm:$0xff]
        %v516 = vld [vmem:[%s323 + $0x20] sm:$0xff]
        %v517 = vld [vmem:[%s323 + $0x28] sm:$0xff]
        %v518 = vld [vmem:[%s323 + $0x30] sm:$0xff]
        %v519 = vld [vmem:[%s323 + $0x38] sm:$0xff]
        %v520 = vld [vmem:[%s323 + $0x40] sm:$0xff]
        %v521 = vld [vmem:[%s323 + $0x48] sm:$0xff]
        %v522 = vld [vmem:[%s323 + $0x50] sm:$0xff]
        %v523 = vld [vmem:[%s323 + $0x58] sm:$0xff]
        %v524 = vld [vmem:[%s323 + $0x60] sm:$0xff]
        %v525 = vld [vmem:[%s323 + $0x68] sm:$0xff]
        %v526 = vld [vmem:[%s323 + $0x70] sm:$0xff]
        %v527 = vld [vmem:[%s323 + $0x78] sm:$0xff]
        %v528 = vlaneseq
        %v529 = vshrl.u32 %v528, 7
        %v530 = vsub.s32 0, %v529
        %v531 = vrot.slane %v511, %v530
        %532 = vmatprep.subr.mxu0 0.0
        %533 = vmatpush1.msra.mxu0 %v512
        %534 = vmatprep.subr.mxu0 0.0
        %535 = vmatpush1.msra.mxu0 %v513
        %536 = vmatprep.subr.mxu0 0.0
        %537 = vmatpush1.msra.mxu0 %v514
        %538 = vmatprep.subr.mxu0 0.0
        %539 = vmatpush1.msra.mxu0 %v515
        %540 = vmatprep.subr.mxu0 0.0
        %541 = vmatpush1.msra.mxu0 %v516
        %542 = vmatprep.subr.mxu0 0.0
        %543 = vmatpush1.msra.mxu0 %v517
        %544 = vmatprep.subr.mxu0 0.0
        %545 = vmatpush1.msra.mxu0 %v518
        %546 = vmatprep.subr.mxu0 0.0
        %547 = vmatpush1.msra.mxu0 %v519
        %548 = vmatprep.subr.mxu0 0.0
        %549 = vmatpush1.msra.mxu0 %v520
        %550 = vmatprep.subr.mxu0 0.0
        %551 = vmatpush1.msra.mxu0 %v521
        %552 = vmatprep.subr.mxu0 0.0
        %553 = vmatpush1.msra.mxu0 %v522
        %554 = vmatprep.subr.mxu0 0.0
        %555 = vmatpush1.msra.mxu0 %v523
        %556 = vmatprep.subr.mxu0 0.0
        %557 = vmatpush1.msra.mxu0 %v524
        %558 = vmatprep.subr.mxu0 0.0
        %559 = vmatpush1.msra.mxu0 %v525
        %560 = vmatprep.subr.mxu0 0.0
        %561 = vmatpush1.msra.mxu0 %v526
        %562 = vmatprep.subr.mxu0 0.0
        %563 = vmatpush1.msra.mxu0 %v527
        %564 = vmatprep.subr.mxu0 0.0
        %565 = vmatpush1.msra.mxu0 0.0
        %566 = vmatprep.subr.mxu0 0.0
        %567 = vmatpush1.msra.mxu0 0.0
        %568 = vmatprep.subr.mxu0 0.0
        %569 = vmatpush1.msra.mxu0 0.0
        %570 = vmatprep.subr.mxu0 0.0
        %571 = vmatpush1.msra.mxu0 0.0
        %572 = vmatprep.subr.mxu0 0.0
        %573 = vmatpush1.msra.mxu0 0.0
        %574 = vmatprep.subr.mxu0 0.0
        %575 = vmatpush1.msra.mxu0 0.0
        %576 = vmatprep.subr.mxu0 0.0
        %577 = vmatpush1.msra.mxu0 0.0
        %578 = vmatprep.subr.mxu0 0.0
        %579 = vmatpush1.msra.mxu0 0.0
        %580 = vmatprep.subr.mxu0 0.0
        %581 = vmatpush1.msra.mxu0 0.0
        %582 = vmatprep.subr.mxu0 0.0
        %583 = vmatpush1.msra.mxu0 0.0
        %584 = vmatprep.subr.mxu0 0.0
        %585 = vmatpush1.msra.mxu0 0.0
        %586 = vmatprep.subr.mxu0 0.0
        %587 = vmatpush1.msra.mxu0 0.0
        %588 = vmatprep.subr.mxu0 0.0
        %589 = vmatpush1.msra.mxu0 0.0
        %590 = vmatprep.subr.mxu0 0.0
        %591 = vmatpush1.msra.mxu0 0.0
        %592 = vmatprep.subr.mxu0 0.0
        %593 = vmatpush1.msra.mxu0 0.0
        %594 = vmatprep.subr.mxu0 0.0
        %595 = vmatpush1.msra.mxu0 0.0
        %596 = vmatprep.mubr.f32.mxu0 0.0
        %597 = vmatmul.mubr.f32.gmra.mrb[0].mxu0 %v506
        %v598 = vpop.f32.mrb[0].mxu0
        %v599 = vadd.f32 %v531, %v598
        %v600 = vpop.f32.mrb[0].mxu0
        %601 = vdwg.mxu0
        %v602 = vmax.f32 %v599, 0.0
        %v603 = vld [vmem:[%s332] sm:$0xff]
        %v604 = vld [vmem:[%s332 + $0x8] sm:$0xff]
        %v605 = vld [vmem:[%s332 + $0x10] sm:$0xff]
        %v606 = vld [vmem:[%s332 + $0x18] sm:$0xff]
        %v607 = vld [vmem:[%s332 + $0x20] sm:$0xff]
        %v608 = vld [vmem:[%s332 + $0x28] sm:$0xff]
        %v609 = vld [vmem:[%s332 + $0x30] sm:$0xff]
        %v610 = vld [vmem:[%s332 + $0x38] sm:$0xff]
        %v611 = vld [vmem:[%s332 + $0x40] sm:$0xff]
        %v612 = vld [vmem:[%s332 + $0x48] sm:$0xff]
        %v613 = vld [vmem:[%s332 + $0x50] sm:$0xff]
        %v614 = vld [vmem:[%s332 + $0x58] sm:$0xff]
        %v615 = vld [vmem:[%s332 + $0x60] sm:$0xff]
        %v616 = vld [vmem:[%s332 + $0x68] sm:$0xff]
        %v617 = vld [vmem:[%s332 + $0x70] sm:$0xff]
        %v618 = vld [vmem:[%s332 + $0x78] sm:$0xff]
        %619 = vmatprep.subr.mxu0 0.0
        %620 = vmatpush1.msra.mxu0 %v603
        %621 = vmatprep.subr.mxu0 0.0
        %622 = vmatpush1.msra.mxu0 %v604
        %623 = vmatprep.subr.mxu0 0.0
        %624 = vmatpush1.msra.mxu0 %v605
        %625 = vmatprep.subr.mxu0 0.0
        %626 = vmatpush1.msra.mxu0 %v606
        %627 = vmatprep.subr.mxu0 0.0
        %628 = vmatpush1.msra.mxu0 %v607
        %629 = vmatprep.subr.mxu0 0.0
        %630 = vmatpush1.msra.mxu0 %v608
        %631 = vmatprep.subr.mxu0 0.0
        %632 = vmatpush1.msra.mxu0 %v609
        %633 = vmatprep.subr.mxu0 0.0
        %634 = vmatpush1.msra.mxu0 %v610
        %635 = vmatprep.subr.mxu0 0.0
        %636 = vmatpush1.msra.mxu0 %v611
        %637 = vmatprep.subr.mxu0 0.0
        %638 = vmatpush1.msra.mxu0 %v612
        %639 = vmatprep.subr.mxu0 0.0
        %640 = vmatpush1.msra.mxu0 %v613
        %641 = vmatprep.subr.mxu0 0.0
        %642 = vmatpush1.msra.mxu0 %v614
        %643 = vmatprep.subr.mxu0 0.0
        %644 = vmatpush1.msra.mxu0 %v615
        %645 = vmatprep.subr.mxu0 0.0
        %646 = vmatpush1.msra.mxu0 %v616
        %647 = vmatprep.subr.mxu0 0.0
        %648 = vmatpush1.msra.mxu0 %v617
        %649 = vmatprep.subr.mxu0 0.0
        %650 = vmatpush1.msra.mxu0 %v618
        %651 = vmatprep.subr.mxu0 0.0
        %652 = vmatpush1.msra.mxu0 0.0
        %653 = vmatprep.subr.mxu0 0.0
        %654 = vmatpush1.msra.mxu0 0.0
        %655 = vmatprep.subr.mxu0 0.0
        %656 = vmatpush1.msra.mxu0 0.0
        %657 = vmatprep.subr.mxu0 0.0
        %658 = vmatpush1.msra.mxu0 0.0
        %659 = vmatprep.subr.mxu0 0.0
        %660 = vmatpush1.msra.mxu0 0.0
        %661 = vmatprep.subr.mxu0 0.0
        %662 = vmatpush1.msra.mxu0 0.0
        %663 = vmatprep.subr.mxu0 0.0
        %664 = vmatpush1.msra.mxu0 0.0
        %665 = vmatprep.subr.mxu0 0.0
        %666 = vmatpush1.msra.mxu0 0.0
        %667 = vmatprep.subr.mxu0 0.0
        %668 = vmatpush1.msra.mxu0 0.0
        %669 = vmatprep.subr.mxu0 0.0
        %670 = vmatpush1.msra.mxu0 0.0
        %671 = vmatprep.subr.mxu0 0.0
        %672 = vmatpush1.msra.mxu0 0.0
        %673 = vmatprep.subr.mxu0 0.0
        %674 = vmatpush1.msra.mxu0 0.0
        %675 = vmatprep.subr.mxu0 0.0
        %676 = vmatpush1.msra.mxu0 0.0
        %677 = vmatprep.subr.mxu0 0.0
        %678 = vmatpush1.msra.mxu0 0.0
        %679 = vmatprep.subr.mxu0 0.0
        %680 = vmatpush1.msra.mxu0 0.0
        %681 = vmatprep.subr.mxu0 0.0
        %682 = vmatpush1.msra.mxu0 0.0
        %683 = vmatprep.mubr.f32.mxu0 0.0
        %684 = vmatmul.mubr.f32.gmra.mrb[0].mxu0 %v602
        %v685 = vpop.f32.mrb[0].mxu0
        %v686 = vadd.f32 0.0, %v685
        %v687 = vpop.f32.mrb[0].mxu0
        %688 = vdwg.mxu0
        %v689 = vrot.slane %v686, 4
        %v690 = vadd.f32 %v686, %v689
        %v691 = vrot.slane %v690, 2
        %v692 = vadd.f32 %v690, %v691
        %v693 = vrot.slane %v692, 1
        %v694 = vadd.f32 %v692, %v693
        %v695 = vrcp.pop 8.0
        %v696 = vmul.f32 %v694, %v695
        %v697 = vsub.f32 %v686, %v696
        %v698 = vmul.f32 %v697, %v697
        %v699 = vrot.slane %v698, 4
        %v700 = vadd.f32 %v698, %v699
        %v701 = vrot.slane %v700, 2
        %v702 = vadd.f32 %v700, %v701
        %v703 = vrot.slane %v702, 1
        %v704 = vadd.f32 %v702, %v703
        %v705 = vmul.f32 %v704, %v695
        %v706 = vadd.f32 %v705, 1e-05
        %v707 = vrsqrt.pop %v706
        %v708 = vmul.f32 %v511, %v707
        %v709 = vlaneseq
        %v710 = vshrl.u32 %v709, 7
        %v711 = vsub.s32 1, %v710
        %v712 = vrot.slane %v708, %v711
        %v713 = vmul.f32 %v697, %v712
        %v714 = vlaneseq
        %v715 = vshrl.u32 %v714, 7
        %v716 = vsub.s32 2, %v715
        %v717 = vrot.slane %v511, %v716
        %v718 = vadd.f32 %v713, %v717
        %p719 = scmp.ne.s32.totalorder %s21, 1
        // Predicated region
        $region69: #{tpu_custom_call.1} parent=47 // pred_check
          %p720 = pneg %p719
        $region70: #{tpu_custom_call.1} parent=47 // pred_check_branch
          %722 = sbr.rel (%p720) target = $region72
        $region71: #{tpu_custom_call.1} parent=47 // pred_region
          %v723 = vmax.f32 %v718, 0.0
          %v724 = vpack.c.bf16 %v723, %v723
          %725 = vst [vmem:[#allocation2] sm:$0xf] %v724
        $region72: #{tpu_custom_call.1} parent=47 // pred_fallthru
          _
        %p726 = scmp.eq.s32.totalorder %s21, 1
        // Predicated region
        $region73: #{tpu_custom_call.1} parent=47 // pred_check
          %p727 = pneg %p726
        $region74: #{tpu_custom_call.1} parent=47 // pred_check_branch
          %729 = sbr.rel (%p727) target = $region76
        $region75: #{tpu_custom_call.1} parent=47 // pred_region
          %730 = vst [vmem:[#allocation10] sm:$0xff] %v718
        $region76: #{tpu_custom_call.1} parent=47 // pred_fallthru
          _
        // Predicated region
        $region77: #{tpu_custom_call.1} parent=47 // pred_check
          %p731 = pneg %p201
        $region78: #{tpu_custom_call.1} parent=47 // pred_check_branch
          %733 = sbr.rel (%p731) target = $region80
        $region79: #{tpu_custom_call.1} parent=47 // pred_region
          %s735 = ssub.s32 128, 128
          %736 = vsyncadd [#allocation5], %s735
          %s738 = sshll.u32 [#allocation10], 4
          %s739 = int_to_ptr.vmem [resolvable:$true] %s738
          %741 = dma.vmem_to_hbm [thread:$0]  %s739, 128, %s7, [#allocation5]
        $region80: #{tpu_custom_call.1} parent=47 // pred_fallthru
          _
        // Predicated region
        $region81: #{tpu_custom_call.1} parent=47 // pred_check
          %p742 = pneg %p201
        $region82: #{tpu_custom_call.1} parent=47 // pred_check_branch
          %744 = sbr.rel (%p742) target = $region84
        $region83: #{tpu_custom_call.1} parent=47 // pred_region
          %745 = dma.done [#allocation5], 128
        $region84: #{tpu_custom_call.1} parent=47 // pred_fallthru
          _
      $region48: #{tpu_custom_call.1} parent=5 // pred_fallthru
        _
      %p746 = scmp.le.s32.totalorder 2, %s16
      // Predicated region
      $region85: #{tpu_custom_call.1} parent=5 // pred_check
        %p747 = pneg %p746
      $region86: #{tpu_custom_call.1} parent=5 // pred_check_branch
        %749 = sbr.rel (%p747) target = $region88
      $region87: #{tpu_custom_call.1} parent=5 // pred_region
        %s750 = ssub.s32 %s16, 2
      $region88: #{tpu_custom_call.1} parent=5 // pred_fallthru
        _
    $region6: #{tpu_custom_call.1} parent=1 // loop_footer
      %s20 = sadd.s32 1, %s16
    $region7: #{tpu_custom_call.1} parent=1 // loop_footer_branch
      %15 = sbr.rel target = $region3
    $region8: #{tpu_custom_call.1} parent=1 // loop_exit
      _
    %751 = vsyncpa [#allocation4], 1
    %s752 = scalar_lea.sflag [#allocation4], 1
    %753 = vsyncpa %s752, 1
    %754 = vsyncpa [#allocation7], 1
    %755 = vsyncpa [#allocation5], 1
    %s756 = scalar_lea.sflag [#allocation5], 1
    %757 = vsyncpa %s756, 1

// kernel: tpu_custom_call.1
$region0: #{tpu_custom_call.1}
  #allocation0 [shape = 'u32[]', space=smem, size = 0x4, offset = 0x4, fixed_abs, tag = 'smem constant byte address 0x4 - core index']
  #allocation1 [shape = 'u32[144,128]{1,0:T(1,128)}', space=vmem, size = 0x12000, scoped, tag = 'internal scratch']
  #allocation2 [shape = 'bf16[8,128]{1,0:T(8,128)(2,1)}', space=vmem, size = 0x800, scoped, tag = 'scratch operand']
  %s0 = inlined_call_operand.hbm [shape: bf16[8,8], index: 0, kind: input, shape index: {}]
  %s1 = inlined_call_operand.vmem [shape: f32[8,8], index: 1, kind: input, shape index: {}]
  %s2 = inlined_call_operand.hbm [shape: bf16[8,128], index: 2, kind: input, shape index: {}]
  %s3 = inlined_call_operand.vmem [shape: f32[2,8,128], index: 3, kind: input, shape index: {}]
  %s4 = inlined_call_operand.hbm [shape: f32[2,128,128], index: 4, kind: input, shape index: {}]
  %s5 = inlined_call_operand.hbm [shape: f32[2,128,128], index: 5, kind: input, shape index: {}]
  %s6 = inlined_call_operand.vmem [shape: f32[2,3,128], index: 6, kind: input, shape index: {}]
  %s7 = inlined_call_operand.hbm [shape: f32[8,128], index: 7, kind: output, shape index: {}]
  %s8 = sld [smem:[#allocation0]]
  $region89: #{tpu_custom_call.1} parent=0
    _
  %s10 = ssub.s32 1, %s8
  %s11 = scalar_select 0, %s10, %s8
  $region1: #{tpu_custom_call.1} parent=0
    #allocation3 [shape = 'u8[2048]{0}', space=vmem, size = 0x800, scoped, tag = 'input window, operand 0, single buffered']
    #allocation4 [shape = 's32[2]{0}', space=sflag, size = 0x8, scoped, tag = 'scoped memory for tpu_custom_call.1']
    #allocation5 [shape = 's32[2]{0}', space=sflag, size = 0x8, scoped, tag = 'scoped memory for tpu_custom_call.1']
    #allocation6 [shape = 'u8[2048]{0}', space=vmem, size = 0x800, scoped, tag = 'input window, operand 2, single buffered']
    #allocation7 [shape = 's32[1]{0}', space=sflag, size = 0x4, scoped, tag = 'scoped memory for tpu_custom_call.1']
    #allocation8 [shape = 'u8[131072]{0}', space=vmem, size = 0x20000, scoped, tag = 'input window, operand 4']
    #allocation9 [shape = 'u8[131072]{0}', space=vmem, size = 0x20000, scoped, tag = 'input window, operand 5']
    #allocation10 [shape = 'u8[4096]{0}', space=vmem, size = 0x1000, scoped, tag = 'output window, operand 0, single buffered']
    %12 = vsyncpa [#allocation4], 0
    %13 = vsyncpa [#allocation7], 0
    %14 = vsyncpa [#allocation5], 0
    loop: start=0, step=1, limit=4
    $region2: #{tpu_custom_call.1} parent=1 // loop_pre_header
      _
    $region3: #{tpu_custom_call.1} parent=1 // loop_header
      %s16 = sphi 0, %s20
      %p17 = scmp.ge.s32.totalorder %s16, 4
      %s24 = sphi 0, %s24
      %s26 = sphi 0, %s24
      %s27 = sphi 0, %s26
      %s41 = sphi 0, %s27
      %s45 = sphi 0, %s45
      %s47 = sphi 0, %s45
      %s48 = sphi 0, %s47
      %s62 = sphi 0, %s48
      %s66 = sphi 0, %s66
      %s68 = sphi 0, %s66
      %s69 = sphi 0, %s68
      %s83 = sphi 0, %s69
      %s89 = sphi 0, %s91
      %s92 = sphi 0, %s89
      %s93 = sphi 0, %s92
      %s109 = sphi 0, %s93
      %s115 = sphi 0, %s117
      %s118 = sphi 0, %s115
      %s119 = sphi 0, %s118
      %s135 = sphi 0, %s119
      %s141 = sphi 0, %s143
      %s144 = sphi 0, %s141
      %s145 = sphi 0, %s144
      %s161 = sphi 0, %s145
      %s167 = sphi 0, %s169
      %s170 = sphi 0, %s167
      %s171 = sphi 0, %s170
      %s187 = sphi 0, %s171
      %s191 = sphi 0, %s191
      %s193 = sphi 0, %s191
      %s194 = sphi 0, %s193
      %s208 = sphi 0, %s194
    $region4: #{tpu_custom_call.1} parent=1 // loop_header_branch
      %19 = sbr.rel (%p17) target = $region8
    $region5: #{tpu_custom_call.1} parent=1 // loop_body
      %s21 = ssub.s32 %s16, 1
      %s22 = ssub.s32 %s16, 2
      %s23 = sadd.s32 %s16, 1
      %s25 = sadd.s32 %s24, 1
      %p28 = scmp.eq.s32.totalorder %s16, 1
      %p29 = scmp.ne.s32.totalorder %s24, %s26
      %p30 = scmp.eq.s32.totalorder %s16, 0
      %p31 = por %p29, %p30
      %p32 = scmp.ne.s32.totalorder %s24, %s26
      %p33 = scmp.eq.s32.totalorder %s21, 1
      %p34 = por %p32, %p33
      %p35 = scmp.ne.s32.totalorder %s26, %s27
      %p36 = scmp.eq.s32.totalorder %s21, 0
      %p37 = por %p35, %p36
      %p38 = scmp.ne.s32.totalorder %s26, %s27
      %p39 = scmp.eq.s32.totalorder %s22, 1
      %p40 = por %p38, %p39
      %p42 = scmp.ne.s32.totalorder %s27, %s41
      %p43 = scmp.eq.s32.totalorder %s22, 0
      %p44 = por %p42, %p43
      %s46 = sadd.s32 %s45, 1
      %p49 = scmp.eq.s32.totalorder %s16, 1
      %p50 = scmp.ne.s32.totalorder %s45, %s47
      %p51 = scmp.eq.s32.totalorder %s16, 0
      %p52 = por %p50, %p51
      %p53 = scmp.ne.s32.totalorder %s45, %s47
      %p54 = scmp.eq.s32.totalorder %s21, 1
      %p55 = por %p53, %p54
      %p56 = scmp.ne.s32.totalorder %s47, %s48
      %p57 = scmp.eq.s32.totalorder %s21, 0
      %p58 = por %p56, %p57
      %p59 = scmp.ne.s32.totalorder %s47, %s48
      %p60 = scmp.eq.s32.totalorder %s22, 1
      %p61 = por %p59, %p60
      %p63 = scmp.ne.s32.totalorder %s48, %s62
      %p64 = scmp.eq.s32.totalorder %s22, 0
      %p65 = por %p63, %p64
      %s67 = sadd.s32 %s66, 1
      %p70 = scmp.eq.s32.totalorder %s16, 1
      %p71 = scmp.ne.s32.totalorder %s66, %s68
      %p72 = scmp.eq.s32.totalorder %s16, 0
      %p73 = por %p71, %p72
      %p74 = scmp.ne.s32.totalorder %s66, %s68
      %p75 = scmp.eq.s32.totalorder %s21, 1
      %p76 = por %p74, %p75
      %p77 = scmp.ne.s32.totalorder %s68, %s69
      %p78 = scmp.eq.s32.totalorder %s21, 0
      %p79 = por %p77, %p78
      %p80 = scmp.ne.s32.totalorder %s68, %s69
      %p81 = scmp.eq.s32.totalorder %s22, 1
      %p82 = por %p80, %p81
      %p84 = scmp.ne.s32.totalorder %s69, %s83
      %p85 = scmp.eq.s32.totalorder %s22, 0
      %p86 = por %p84, %p85
      %s87 = ssub.s32 %s16, %s23
      %p88 = scmp.eq.s32.totalorder %s87, 0
      %s90 = sadd.s32 %s89, 1
      %s91 = scalar_select %p88, %s89, %s90
      %p94 = pneg %p88
      %p95 = scmp.eq.s32.totalorder %s16, 1
      %p96 = por %p94, %p95
      %p97 = scmp.ne.s32.totalorder %s89, %s92
      %p98 = scmp.eq.s32.totalorder %s16, 0
      %p99 = por %p97, %p98
      %p100 = scmp.ne.s32.totalorder %s89, %s92
      %p101 = scmp.eq.s32.totalorder %s21, 1
      %p102 = por %p100, %p101
      %p103 = scmp.ne.s32.totalorder %s92, %s93
      %p104 = scmp.eq.s32.totalorder %s21, 0
      %p105 = por %p103, %p104
      %p106 = scmp.ne.s32.totalorder %s92, %s93
      %p107 = scmp.eq.s32.totalorder %s22, 1
      %p108 = por %p106, %p107
      %p110 = scmp.ne.s32.totalorder %s93, %s109
      %p111 = scmp.eq.s32.totalorder %s22, 0
      %p112 = por %p110, %p111
      %s113 = ssub.s32 %s16, %s23
      %p114 = scmp.eq.s32.totalorder %s113, 0
      %s116 = sadd.s32 %s115, 1
      %s117 = scalar_select %p114, %s115, %s116
      %p120 = pneg %p114
      %p121 = scmp.eq.s32.totalorder %s16, 1
      %p122 = por %p120, %p121
      %p123 = scmp.ne.s32.totalorder %s115, %s118
      %p124 = scmp.eq.s32.totalorder %s16, 0
      %p125 = por %p123, %p124
      %p126 = scmp.ne.s32.totalorder %s115, %s118
      %p127 = scmp.eq.s32.totalorder %s21, 1
      %p128 = por %p126, %p127
      %p129 = scmp.ne.s32.totalorder %s118, %s119
      %p130 = scmp.eq.s32.totalorder %s21, 0
      %p131 = por %p129, %p130
      %p132 = scmp.ne.s32.totalorder %s118, %s119
      %p133 = scmp.eq.s32.totalorder %s22, 1
      %p134 = por %p132, %p133
      %p136 = scmp.ne.s32.totalorder %s119, %s135
      %p137 = scmp.eq.s32.totalorder %s22, 0
      %p138 = por %p136, %p137
      %s139 = ssub.s32 %s16, %s23
      %p140 = scmp.eq.s32.totalorder %s139, 0
      %s142 = sadd.s32 %s141, 1
      %s143 = scalar_select %p140, %s141, %s142
      %p146 = pneg %p140
      %p147 = scmp.eq.s32.totalorder %s16, 1
      %p148 = por %p146, %p147
      %p149 = scmp.ne.s32.totalorder %s141, %s144
      %p150 = scmp.eq.s32.totalorder %s16, 0
      %p151 = por %p149, %p150
      %p152 = scmp.ne.s32.totalorder %s141, %s144
      %p153 = scmp.eq.s32.totalorder %s21, 1
      %p154 = por %p152, %p153
      %p155 = scmp.ne.s32.totalorder %s144, %s145
      %p156 = scmp.eq.s32.totalorder %s21, 0
      %p157 = por %p155, %p156
      %p158 = scmp.ne.s32.totalorder %s144, %s145
      %p159 = scmp.eq.s32.totalorder %s22, 1
      %p160 = por %p158, %p159
      %p162 = scmp.ne.s32.totalorder %s145, %s161
      %p163 = scmp.eq.s32.totalorder %s22, 0
      %p164 = por %p162, %p163
      %s165 = ssub.s32 %s16, %s23
      %p166 = scmp.eq.s32.totalorder %s165, 0
      %s168 = sadd.s32 %s167, 1
      %s169 = scalar_select %p166, %s167, %s168
      %p172 = pneg %p166
      %p173 = scmp.eq.s32.totalorder %s16, 1
      %p174 = por %p172, %p173
      %p175 = scmp.ne.s32.totalorder %s167, %s170
      %p176 = scmp.eq.s32.totalorder %s16, 0
      %p177 = por %p175, %p176
      %p178 = scmp.ne.s32.totalorder %s167, %s170
      %p179 = scmp.eq.s32.totalorder %s21, 1
      %p180 = por %p178, %p179
      %p181 = scmp.ne.s32.totalorder %s170, %s171
      %p182 = scmp.eq.s32.totalorder %s21, 0
      %p183 = por %p181, %p182
      %p184 = scmp.ne.s32.totalorder %s170, %s171
      %p185 = scmp.eq.s32.totalorder %s22, 1
      %p186 = por %p184, %p185
      %p188 = scmp.ne.s32.totalorder %s171, %s187
      %p189 = scmp.eq.s32.totalorder %s22, 0
      %p190 = por %p188, %p189
      %s192 = sadd.s32 %s191, 1
      %p195 = scmp.eq.s32.totalorder %s16, 1
      %p196 = scmp.ne.s32.totalorder %s191, %s193
      %p197 = scmp.eq.s32.totalorder %s16, 0
      %p198 = por %p196, %p197
      %p199 = scmp.ne.s32.totalorder %s191, %s193
      %p200 = scmp.eq.s32.totalorder %s21, 1
      %p201 = por %p199, %p200
      %p202 = scmp.ne.s32.totalorder %s193, %s194
      %p203 = scmp.eq.s32.totalorder %s21, 0
      %p204 = por %p202, %p203
      %p205 = scmp.ne.s32.totalorder %s193, %s194
      %p206 = scmp.eq.s32.totalorder %s22, 1
      %p207 = por %p205, %p206
      %p209 = scmp.ne.s32.totalorder %s194, %s208
      %p210 = scmp.eq.s32.totalorder %s22, 0
      %p211 = por %p209, %p210
      %p212 = scmp.le.s32.totalorder 1, %s16
      %p213 = scmp.lt.s32.totalorder %s16, 3
      %p214 = pnand %p212, %p213
      %p215 = pneg %p214
      // Predicated region
      $region9: #{tpu_custom_call.1} parent=5 // pred_check
        _
      $region10: #{tpu_custom_call.1} parent=5 // pred_check_branch
        %217 = sbr.rel (%p214) target = $region12
      $region11: #{tpu_custom_call.1} parent=5 // pred_region
        %s218 = ssub.s32 %s16, 1
        // Predicated region
        $region13: #{tpu_custom_call.1} parent=11 // pred_check
          %p219 = pneg %p37
        $region14: #{tpu_custom_call.1} parent=11 // pred_check_branch
          %221 = sbr.rel (%p219) target = $region16
        $region15: #{tpu_custom_call.1} parent=11 // pred_region
          %s223 = ssub.s32 64, 64
          %224 = vsyncadd [#allocation4], %s223
          %s226 = sshll.u32 [#allocation3], 4
          %s227 = int_to_ptr.vmem [resolvable:$true] %s226
          %229 = dma.hbm_to_vmem [thread:$0]  %s0, 64, %s227, [#allocation4]
        $region16: #{tpu_custom_call.1} parent=11 // pred_fallthru
          _
        // Predicated region
        $region17: #{tpu_custom_call.1} parent=11 // pred_check
          %p230 = pneg %p58
        $region18: #{tpu_custom_call.1} parent=11 // pred_check_branch
          %232 = sbr.rel (%p230) target = $region20
        $region19: #{tpu_custom_call.1} parent=11 // pred_region
          _
        $region20: #{tpu_custom_call.1} parent=11 // pred_fallthru
          _
        // Predicated region
        $region21: #{tpu_custom_call.1} parent=11 // pred_check
          %p233 = pneg %p79
        $region22: #{tpu_custom_call.1} parent=11 // pred_check_branch
          %235 = sbr.rel (%p233) target = $region24
        $region23: #{tpu_custom_call.1} parent=11 // pred_region
          %s237 = ssub.s32 64, 64
          %238 = vsyncadd [#allocation7], %s237
          %s240 = sshll.u32 [#allocation6], 4
          %s241 = int_to_ptr.vmem [resolvable:$true] %s240
          %243 = dma.hbm_to_vmem [thread:$0]  %s2, 64, %s241, [#allocation7]
        $region24: #{tpu_custom_call.1} parent=11 // pred_fallthru
          _
      $region12: #{tpu_custom_call.1} parent=5 // pred_fallthru
        _
      %p244 = scmp.lt.s32.totalorder %s16, 2
      // Predicated region
      $region25: #{tpu_custom_call.1} parent=5 // pred_check
        %p245 = pneg %p244
      $region26: #{tpu_custom_call.1} parent=5 // pred_check_branch
        %247 = sbr.rel (%p245) target = $region28
      $region27: #{tpu_custom_call.1} parent=5 // pred_region
        // Predicated region
        $region29: #{tpu_custom_call.1} parent=27 // pred_check
          %p248 = pneg %p99
        $region30: #{tpu_custom_call.1} parent=27 // pred_check_branch
          %250 = sbr.rel (%p248) target = $region32
        $region31: #{tpu_custom_call.1} parent=27 // pred_region
          %p251 = scmp.lt.s32.totalorder %s16, 1
          %s252 = scalar_select %p251, %s16, 1
          %s253 = smul.addr %s252, 8
          %s254 = scalar_lea.vmem %s3, %s253
        $region32: #{tpu_custom_call.1} parent=27 // pred_fallthru
          _
        // Predicated region
        $region33: #{tpu_custom_call.1} parent=27 // pred_check
          %p255 = pneg %p125
        $region34: #{tpu_custom_call.1} parent=27 // pred_check_branch
          %257 = sbr.rel (%p255) target = $region36
        $region35: #{tpu_custom_call.1} parent=27 // pred_region
          %s258 = sand.u32 %s16, 1
          %s259 = scalar_lea.sflag [#allocation4], %s258
          %s260 = sand.u32 %s115, 1
          %s261 = smul.addr %s260, 128
          %s262 = scalar_lea.vmem [#allocation8], %s261
          %s264 = ssub.s32 2048, 2048
          %265 = vsyncadd %s259, %s264
          %s266 = smul.addr %s16, 16
          %s267 = smul.addr %s266, 128
          %s268 = scalar_lea.hbm %s4, %s267
          %s269 = sshll.u32 %s262, 4
          %s270 = int_to_ptr.vmem [resolvable:$true] %s269
          %275 = dma.hbm_to_vmem [thread:$0]  %s268, 2048, %s270, %s259, 128, 128, 8
        $region36: #{tpu_custom_call.1} parent=27 // pred_fallthru
          _
        // Predicated region
        $region37: #{tpu_custom_call.1} parent=27 // pred_check
          %p276 = pneg %p151
        $region38: #{tpu_custom_call.1} parent=27 // pred_check_branch
          %278 = sbr.rel (%p276) target = $region40
        $region39: #{tpu_custom_call.1} parent=27 // pred_region
          %s279 = sand.u32 %s16, 1
          %s280 = scalar_lea.sflag [#allocation4], %s279
          %s281 = sand.u32 %s141, 1
          %s282 = smul.addr %s281, 128
          %s283 = scalar_lea.vmem [#allocation9], %s282
          %s285 = ssub.s32 2048, 2048
          %286 = vsyncadd %s280, %s285
          %s287 = smul.addr %s16, 16
          %s288 = smul.addr %s287, 128
          %s289 = scalar_lea.hbm %s5, %s288
          %s290 = sshll.u32 %s283, 4
          %s291 = int_to_ptr.vmem [resolvable:$true] %s290
          %296 = dma.hbm_to_vmem [thread:$0]  %s289, 2048, %s291, %s280, 128, 128, 8
        $region40: #{tpu_custom_call.1} parent=27 // pred_fallthru
          _
        // Predicated region
        $region41: #{tpu_custom_call.1} parent=27 // pred_check
          %p297 = pneg %p177
        $region42: #{tpu_custom_call.1} parent=27 // pred_check_branch
          %299 = sbr.rel (%p297) target = $region44
        $region43: #{tpu_custom_call.1} parent=27 // pred_region
          %p300 = scmp.lt.s32.totalorder %s16, 1
          %s301 = scalar_select %p300, %s16, 1
          %s302 = smul.addr %s301, 4
          %s303 = scalar_lea.vmem %s6, %s302
        $region44: #{tpu_custom_call.1} parent=27 // pred_fallthru
          _
      $region28: #{tpu_custom_call.1} parent=5 // pred_fallthru
        _
      %p304 = scmp.le.s32.totalorder 1, %s16
      %p305 = scmp.lt.s32.totalorder %s16, 3
      %p306 = pnand %p304, %p305
      %p307 = pneg %p306
      // Predicated region
      $region45: #{tpu_custom_call.1} parent=5 // pred_check
        _
      $region46: #{tpu_custom_call.1} parent=5 // pred_check_branch
        %309 = sbr.rel (%p306) target = $region48
      $region47: #{tpu_custom_call.1} parent=5 // pred_region
        %s310 = ssub.s32 %s16, 1
        // Predicated region
        $region49: #{tpu_custom_call.1} parent=47 // pred_check
          %p311 = pneg %p37
        $region50: #{tpu_custom_call.1} parent=47 // pred_check_branch
          %313 = sbr.rel (%p311) target = $region52
        $region51: #{tpu_custom_call.1} parent=47 // pred_region
          %314 = dma.done [#allocation4], 64
        $region52: #{tpu_custom_call.1} parent=47 // pred_fallthru
          _
        // Predicated region
        $region53: #{tpu_custom_call.1} parent=47 // pred_check
          %p315 = pneg %p79
        $region54: #{tpu_custom_call.1} parent=47 // pred_check_branch
          %317 = sbr.rel (%p315) target = $region56
        $region55: #{tpu_custom_call.1} parent=47 // pred_region
          %318 = dma.done [#allocation7], 64
        $region56: #{tpu_custom_call.1} parent=47 // pred_fallthru
          _
        %s319 = sand.u32 %s21, 1
        %s320 = scalar_lea.sflag [#allocation4], %s319
        %s321 = sand.u32 %s118, 1
        %s322 = smul.addr %s321, 128
        %s323 = scalar_lea.vmem [#allocation8], %s322
        // Predicated region
        $region57: #{tpu_custom_call.1} parent=47 // pred_check
          %p324 = pneg %p131
        $region58: #{tpu_custom_call.1} parent=47 // pred_check_branch
          %326 = sbr.rel (%p324) target = $region60
        $region59: #{tpu_custom_call.1} parent=47 // pred_region
          %327 = dma.done %s320, 2048
        $region60: #{tpu_custom_call.1} parent=47 // pred_fallthru
          _
        %s328 = sand.u32 %s21, 1
        %s329 = scalar_lea.sflag [#allocation4], %s328
        %s330 = sand.u32 %s144, 1
        %s331 = smul.addr %s330, 128
        %s332 = scalar_lea.vmem [#allocation9], %s331
        // Predicated region
        $region61: #{tpu_custom_call.1} parent=47 // pred_check
          %p333 = pneg %p157
        $region62: #{tpu_custom_call.1} parent=47 // pred_check_branch
          %335 = sbr.rel (%p333) target = $region64
        $region63: #{tpu_custom_call.1} parent=47 // pred_region
          %336 = dma.done %s329, 2048
        $region64: #{tpu_custom_call.1} parent=47 // pred_fallthru
          _
        %p337 = pneg %p37
        %p338 = pneg %p34
        %p339 = pneg %p58
        %p340 = pneg %p55
        %p341 = pneg %p79
        %p342 = pneg %p76
        %p343 = scmp.lt.s32.totalorder %s21, 1
        %s344 = scalar_select %p343, %s21, 1
        %s345 = smul.addr %s344, 8
        %s346 = scalar_lea.vmem %s3, %s345
        %p347 = pneg %p105
        %p348 = pneg %p102
        %s349 = sand.u32 %s21, 1
        %s350 = scalar_lea.sflag [#allocation4], %s349
        %s351 = sand.u32 %s118, 1
        %s352 = smul.addr %s351, 128
        %s353 = scalar_lea.vmem [#allocation8], %s352
        %p354 = pneg %p131
        %p355 = pneg %p128
        %s356 = sand.u32 %s21, 1
        %s357 = scalar_lea.sflag [#allocation4], %s356
        %s358 = sand.u32 %s144, 1
        %s359 = smul.addr %s358, 128
        %s360 = scalar_lea.vmem [#allocation9], %s359
        %p361 = pneg %p157
        %p362 = pneg %p154
        %p363 = scmp.lt.s32.totalorder %s21, 1
        %s364 = scalar_select %p363, %s21, 1
        %s365 = smul.addr %s364, 4
        %s366 = scalar_lea.vmem %s6, %s365
        %p367 = pneg %p183
        %p368 = pneg %p180
        %p369 = pneg %p204
        %p370 = pneg %p201
        %p371 = scmp.lt.s32.totalorder %s21, 1
        %s372 = scalar_select %p371, %s21, 1
        %s373 = smul.addr %s372, 8
        %s374 = scalar_lea.vmem %s3, %s373
        %p375 = scmp.lt.s32.totalorder %s21, 1
        %s376 = scalar_select %p375, %s21, 1
        %s377 = smul.addr %s376, 4
        %s378 = scalar_lea.vmem %s6, %s377
        %p380 = scmp.eq.s32.totalorder %s21, 0
        // Predicated region
        $region65: #{tpu_custom_call.1} parent=47 // pred_check
          %p381 = pneg %p380
        $region66: #{tpu_custom_call.1} parent=47 // pred_check_branch
          %383 = sbr.rel (%p381) target = $region68
        $region67: #{tpu_custom_call.1} parent=47 // pred_region
          %v384 = vld [vmem:[#allocation6] sm:$0xf]
          %385 = vst [vmem:[#allocation2] sm:$0xf] %v384
        $region68: #{tpu_custom_call.1} parent=47 // pred_fallthru
          _
        %v386 = vld [vmem:[#allocation2] sm:$0xf]
        %v387 = vld [vmem:[#allocation3] sm:$0xf]
        %v388 = vld [vmem:[%s1] sm:$0xff]
        %v389 = vld [vmem:[%s374] sm:$0xff]
        %vm390 = vcmask 64512
        %v392 = vsel %vm390, %v388, 0
        %394 = vmatprep.subr.mxu0 0.0
        %395 = vmatpush1.msra.mxu0 %v389
        %396 = vmatprep.subr.mxu0 0.0
        %397 = vmatpush1.msra.mxu0 0.0
        %398 = vmatprep.subr.mxu0 0.0
        %399 = vmatpush1.msra.mxu0 0.0
        %400 = vmatprep.subr.mxu0 0.0
        %401 = vmatpush1.msra.mxu0 0.0
        %402 = vmatprep.subr.mxu0 0.0
        %403 = vmatpush1.msra.mxu0 0.0
        %404 = vmatprep.subr.mxu0 0.0
        %405 = vmatpush1.msra.mxu0 0.0
        %406 = vmatprep.subr.mxu0 0.0
        %407 = vmatpush1.msra.mxu0 0.0
        %408 = vmatprep.subr.mxu0 0.0
        %409 = vmatpush1.msra.mxu0 0.0
        %410 = vmatprep.subr.mxu0 0.0
        %411 = vmatpush1.msra.mxu0 0.0
        %412 = vmatprep.subr.mxu0 0.0
        %413 = vmatpush1.msra.mxu0 0.0
        %414 = vmatprep.subr.mxu0 0.0
        %415 = vmatpush1.msra.mxu0 0.0
        %416 = vmatprep.subr.mxu0 0.0
        %417 = vmatpush1.msra.mxu0 0.0
        %418 = vmatprep.subr.mxu0 0.0
        %419 = vmatpush1.msra.mxu0 0.0
        %420 = vmatprep.subr.mxu0 0.0
        %421 = vmatpush1.msra.mxu0 0.0
        %422 = vmatprep.subr.mxu0 0.0
        %423 = vmatpush1.msra.mxu0 0.0
        %424 = vmatprep.subr.mxu0 0.0
        %425 = vmatpush1.msra.mxu0 0.0
        %426 = vmatprep.subr.mxu0 0.0
        %427 = vmatpush1.msra.mxu0 0.0
        %428 = vmatprep.subr.mxu0 0.0
        %429 = vmatpush1.msra.mxu0 0.0
        %430 = vmatprep.subr.mxu0 0.0
        %431 = vmatpush1.msra.mxu0 0.0
        %432 = vmatprep.subr.mxu0 0.0
        %433 = vmatpush1.msra.mxu0 0.0
        %434 = vmatprep.subr.mxu0 0.0
        %435 = vmatpush1.msra.mxu0 0.0
        %436 = vmatprep.subr.mxu0 0.0
        %437 = vmatpush1.msra.mxu0 0.0
        %438 = vmatprep.subr.mxu0 0.0
        %439 = vmatpush1.msra.mxu0 0.0
        %440 = vmatprep.subr.mxu0 0.0
        %441 = vmatpush1.msra.mxu0 0.0
        %442 = vmatprep.subr.mxu0 0.0
        %443 = vmatpush1.msra.mxu0 0.0
        %444 = vmatprep.subr.mxu0 0.0
        %445 = vmatpush1.msra.mxu0 0.0
        %446 = vmatprep.subr.mxu0 0.0
        %447 = vmatpush1.msra.mxu0 0.0
        %448 = vmatprep.subr.mxu0 0.0
        %449 = vmatpush1.msra.mxu0 0.0
        %450 = vmatprep.subr.mxu0 0.0
        %451 = vmatpush1.msra.mxu0 0.0
        %452 = vmatprep.subr.mxu0 0.0
        %453 = vmatpush1.msra.mxu0 0.0
        %454 = vmatprep.subr.mxu0 0.0
        %455 = vmatpush1.msra.mxu0 0.0
        %456 = vmatprep.subr.mxu0 0.0
        %457 = vmatpush1.msra.mxu0 0.0
        %458 = vmatprep.mubr.f32.mxu0 0.0
        %459 = vmatmul.mubr.f32.gmra.mrb[0].mxu0 %v392
        %v460 = vpop.f32.mrb[0].mxu0
        %v461 = vadd.f32 0.0, %v460
        %v462 = vpop.f32.mrb[0].mxu0
        %463 = vdwg.mxu0
        %v465 = vsel %vm390, %v387, 0
        %vm467 = vcmask 1043456
        %v469 = vsel %vm467, %v386, 0
        %471 = vmatprep.subr.bf16.mxu0 0
        %472 = vmatpush1.bf16.msra.mxu0 %v469
        %473 = vmatprep.subr.bf16.mxu0 0
        %474 = vmatpush1.bf16.msra.mxu0 0
        %475 = vmatprep.subr.bf16.mxu0 0
        %476 = vmatpush1.bf16.msra.mxu0 0
        %477 = vmatprep.subr.bf16.mxu0 0
        %478 = vmatpush1.bf16.msra.mxu0 0
        %479 = vmatprep.subr.bf16.mxu0 0
        %480 = vmatpush1.bf16.msra.mxu0 0
        %481 = vmatprep.subr.bf16.mxu0 0
        %482 = vmatpush1.bf16.msra.mxu0 0
        %483 = vmatprep.subr.bf16.mxu0 0
        %484 = vmatpush1.bf16.msra.mxu0 0
        %485 = vmatprep.subr.bf16.mxu0 0
        %486 = vmatpush1.bf16.msra.mxu0 0
        %487 = vmatprep.subr.bf16.mxu0 0
        %488 = vmatpush1.bf16.msra.mxu0 0
        %489 = vmatprep.subr.bf16.mxu0 0
        %490 = vmatpush1.bf16.msra.mxu0 0
        %491 = vmatprep.subr.bf16.mxu0 0
        %492 = vmatpush1.bf16.msra.mxu0 0
        %493 = vmatprep.subr.bf16.mxu0 0
        %494 = vmatpush1.bf16.msra.mxu0 0
        %495 = vmatprep.subr.bf16.mxu0 0
        %496 = vmatpush1.bf16.msra.mxu0 0
        %497 = vmatprep.subr.bf16.mxu0 0
        %498 = vmatpush1.bf16.msra.mxu0 0
        %499 = vmatprep.subr.bf16.mxu0 0
        %500 = vmatpush1.bf16.msra.mxu0 0
        %501 = vmatprep.subr.bf16.mxu0 0
        %502 = vmatpush1.bf16.msra.mxu0 0
        %503 = vmatprep.mubr.bf16.mxu0 0
        %504 = vmatmul.mubr.bf16.gmra.mrb[0].mxu0 %v465
        %v505 = vpop.f32.mrb[0].mxu0
        %v506 = vadd.f32 %v461, %v505
        %v507 = vpop.f32.mrb[0].mxu0
        %v508 = vpop.f32.mrb[0].mxu0
        %v509 = vpop.f32.mrb[0].mxu0
        %510 = vdwg.mxu0
        %v511 = vld [vmem:[%s378] sm:$0x7]
        %v512 = vld [vmem:[%s323] sm:$0xff]
        %v513 = vld [vmem:[%s323 + $0x8] sm:$0xff]
        %v514 = vld [vmem:[%s323 + $0x10] sm:$0xff]
        %v515 = vld [vmem:[%s323 + $0x18] sm:$0xff]
        %v516 = vld [vmem:[%s323 + $0x20] sm:$0xff]
        %v517 = vld [vmem:[%s323 + $0x28] sm:$0xff]
        %v518 = vld [vmem:[%s323 + $0x30] sm:$0xff]
        %v519 = vld [vmem:[%s323 + $0x38] sm:$0xff]
        %v520 = vld [vmem:[%s323 + $0x40] sm:$0xff]
        %v521 = vld [vmem:[%s323 + $0x48] sm:$0xff]
        %v522 = vld [vmem:[%s323 + $0x50] sm:$0xff]
        %v523 = vld [vmem:[%s323 + $0x58] sm:$0xff]
        %v524 = vld [vmem:[%s323 + $0x60] sm:$0xff]
        %v525 = vld [vmem:[%s323 + $0x68] sm:$0xff]
        %v526 = vld [vmem:[%s323 + $0x70] sm:$0xff]
        %v527 = vld [vmem:[%s323 + $0x78] sm:$0xff]
        %v528 = vlaneseq
        %v529 = vshrl.u32 %v528, 7
        %v530 = vsub.s32 0, %v529
        %v531 = vrot.slane %v511, %v530
        %532 = vmatprep.subr.mxu0 0.0
        %533 = vmatpush1.msra.mxu0 %v512
        %534 = vmatprep.subr.mxu0 0.0
        %535 = vmatpush1.msra.mxu0 %v513
        %536 = vmatprep.subr.mxu0 0.0
        %537 = vmatpush1.msra.mxu0 %v514
        %538 = vmatprep.subr.mxu0 0.0
        %539 = vmatpush1.msra.mxu0 %v515
        %540 = vmatprep.subr.mxu0 0.0
        %541 = vmatpush1.msra.mxu0 %v516
        %542 = vmatprep.subr.mxu0 0.0
        %543 = vmatpush1.msra.mxu0 %v517
        %544 = vmatprep.subr.mxu0 0.0
        %545 = vmatpush1.msra.mxu0 %v518
        %546 = vmatprep.subr.mxu0 0.0
        %547 = vmatpush1.msra.mxu0 %v519
        %548 = vmatprep.subr.mxu0 0.0
        %549 = vmatpush1.msra.mxu0 %v520
        %550 = vmatprep.subr.mxu0 0.0
        %551 = vmatpush1.msra.mxu0 %v521
        %552 = vmatprep.subr.mxu0 0.0
        %553 = vmatpush1.msra.mxu0 %v522
        %554 = vmatprep.subr.mxu0 0.0
        %555 = vmatpush1.msra.mxu0 %v523
        %556 = vmatprep.subr.mxu0 0.0
        %557 = vmatpush1.msra.mxu0 %v524
        %558 = vmatprep.subr.mxu0 0.0
        %559 = vmatpush1.msra.mxu0 %v525
        %560 = vmatprep.subr.mxu0 0.0
        %561 = vmatpush1.msra.mxu0 %v526
        %562 = vmatprep.subr.mxu0 0.0
        %563 = vmatpush1.msra.mxu0 %v527
        %564 = vmatprep.subr.mxu0 0.0
        %565 = vmatpush1.msra.mxu0 0.0
        %566 = vmatprep.subr.mxu0 0.0
        %567 = vmatpush1.msra.mxu0 0.0
        %568 = vmatprep.subr.mxu0 0.0
        %569 = vmatpush1.msra.mxu0 0.0
        %570 = vmatprep.subr.mxu0 0.0
        %571 = vmatpush1.msra.mxu0 0.0
        %572 = vmatprep.subr.mxu0 0.0
        %573 = vmatpush1.msra.mxu0 0.0
        %574 = vmatprep.subr.mxu0 0.0
        %575 = vmatpush1.msra.mxu0 0.0
        %576 = vmatprep.subr.mxu0 0.0
        %577 = vmatpush1.msra.mxu0 0.0
        %578 = vmatprep.subr.mxu0 0.0
        %579 = vmatpush1.msra.mxu0 0.0
        %580 = vmatprep.subr.mxu0 0.0
        %581 = vmatpush1.msra.mxu0 0.0
        %582 = vmatprep.subr.mxu0 0.0
        %583 = vmatpush1.msra.mxu0 0.0
        %584 = vmatprep.subr.mxu0 0.0
        %585 = vmatpush1.msra.mxu0 0.0
        %586 = vmatprep.subr.mxu0 0.0
        %587 = vmatpush1.msra.mxu0 0.0
        %588 = vmatprep.subr.mxu0 0.0
        %589 = vmatpush1.msra.mxu0 0.0
        %590 = vmatprep.subr.mxu0 0.0
        %591 = vmatpush1.msra.mxu0 0.0
        %592 = vmatprep.subr.mxu0 0.0
        %593 = vmatpush1.msra.mxu0 0.0
        %594 = vmatprep.subr.mxu0 0.0
        %595 = vmatpush1.msra.mxu0 0.0
        %596 = vmatprep.mubr.f32.mxu0 0.0
        %597 = vmatmul.mubr.f32.gmra.mrb[0].mxu0 %v506
        %v598 = vpop.f32.mrb[0].mxu0
        %v599 = vadd.f32 %v531, %v598
        %v600 = vpop.f32.mrb[0].mxu0
        %601 = vdwg.mxu0
        %v602 = vmax.f32 %v599, 0.0
        %v603 = vld [vmem:[%s332] sm:$0xff]
        %v604 = vld [vmem:[%s332 + $0x8] sm:$0xff]
        %v605 = vld [vmem:[%s332 + $0x10] sm:$0xff]
        %v606 = vld [vmem:[%s332 + $0x18] sm:$0xff]
        %v607 = vld [vmem:[%s332 + $0x20] sm:$0xff]
        %v608 = vld [vmem:[%s332 + $0x28] sm:$0xff]
        %v609 = vld [vmem:[%s332 + $0x30] sm:$0xff]
        %v610 = vld [vmem:[%s332 + $0x38] sm:$0xff]
        %v611 = vld [vmem:[%s332 + $0x40] sm:$0xff]
        %v612 = vld [vmem:[%s332 + $0x48] sm:$0xff]
        %v613 = vld [vmem:[%s332 + $0x50] sm:$0xff]
        %v614 = vld [vmem:[%s332 + $0x58] sm:$0xff]
        %v615 = vld [vmem:[%s332 + $0x60] sm:$0xff]
        %v616 = vld [vmem:[%s332 + $0x68] sm:$0xff]
        %v617 = vld [vmem:[%s332 + $0x70] sm:$0xff]
        %v618 = vld [vmem:[%s332 + $0x78] sm:$0xff]
        %619 = vmatprep.subr.mxu0 0.0
        %620 = vmatpush1.msra.mxu0 %v603
        %621 = vmatprep.subr.mxu0 0.0
        %622 = vmatpush1.msra.mxu0 %v604
        %623 = vmatprep.subr.mxu0 0.0
        %624 = vmatpush1.msra.mxu0 %v605
        %625 = vmatprep.subr.mxu0 0.0
        %626 = vmatpush1.msra.mxu0 %v606
        %627 = vmatprep.subr.mxu0 0.0
        %628 = vmatpush1.msra.mxu0 %v607
        %629 = vmatprep.subr.mxu0 0.0
        %630 = vmatpush1.msra.mxu0 %v608
        %631 = vmatprep.subr.mxu0 0.0
        %632 = vmatpush1.msra.mxu0 %v609
        %633 = vmatprep.subr.mxu0 0.0
        %634 = vmatpush1.msra.mxu0 %v610
        %635 = vmatprep.subr.mxu0 0.0
        %636 = vmatpush1.msra.mxu0 %v611
        %637 = vmatprep.subr.mxu0 0.0
        %638 = vmatpush1.msra.mxu0 %v612
        %639 = vmatprep.subr.mxu0 0.0
        %640 = vmatpush1.msra.mxu0 %v613
        %641 = vmatprep.subr.mxu0 0.0
        %642 = vmatpush1.msra.mxu0 %v614
        %643 = vmatprep.subr.mxu0 0.0
        %644 = vmatpush1.msra.mxu0 %v615
        %645 = vmatprep.subr.mxu0 0.0
        %646 = vmatpush1.msra.mxu0 %v616
        %647 = vmatprep.subr.mxu0 0.0
        %648 = vmatpush1.msra.mxu0 %v617
        %649 = vmatprep.subr.mxu0 0.0
        %650 = vmatpush1.msra.mxu0 %v618
        %651 = vmatprep.subr.mxu0 0.0
        %652 = vmatpush1.msra.mxu0 0.0
        %653 = vmatprep.subr.mxu0 0.0
        %654 = vmatpush1.msra.mxu0 0.0
        %655 = vmatprep.subr.mxu0 0.0
        %656 = vmatpush1.msra.mxu0 0.0
        %657 = vmatprep.subr.mxu0 0.0
        %658 = vmatpush1.msra.mxu0 0.0
        %659 = vmatprep.subr.mxu0 0.0
        %660 = vmatpush1.msra.mxu0 0.0
        %661 = vmatprep.subr.mxu0 0.0
        %662 = vmatpush1.msra.mxu0 0.0
        %663 = vmatprep.subr.mxu0 0.0
        %664 = vmatpush1.msra.mxu0 0.0
        %665 = vmatprep.subr.mxu0 0.0
        %666 = vmatpush1.msra.mxu0 0.0
        %667 = vmatprep.subr.mxu0 0.0
        %668 = vmatpush1.msra.mxu0 0.0
        %669 = vmatprep.subr.mxu0 0.0
        %670 = vmatpush1.msra.mxu0 0.0
        %671 = vmatprep.subr.mxu0 0.0
        %672 = vmatpush1.msra.mxu0 0.0
        %673 = vmatprep.subr.mxu0 0.0
        %674 = vmatpush1.msra.mxu0 0.0
        %675 = vmatprep.subr.mxu0 0.0
        %676 = vmatpush1.msra.mxu0 0.0
        %677 = vmatprep.subr.mxu0 0.0
        %678 = vmatpush1.msra.mxu0 0.0
        %679 = vmatprep.subr.mxu0 0.0
        %680 = vmatpush1.msra.mxu0 0.0
        %681 = vmatprep.subr.mxu0 0.0
        %682 = vmatpush1.msra.mxu0 0.0
        %683 = vmatprep.mubr.f32.mxu0 0.0
        %684 = vmatmul.mubr.f32.gmra.mrb[0].mxu0 %v602
        %v685 = vpop.f32.mrb[0].mxu0
        %v686 = vadd.f32 0.0, %v685
        %v687 = vpop.f32.mrb[0].mxu0
        %688 = vdwg.mxu0
        %v689 = vrot.slane %v686, 4
        %v690 = vadd.f32 %v686, %v689
        %v691 = vrot.slane %v690, 2
        %v692 = vadd.f32 %v690, %v691
        %v693 = vrot.slane %v692, 1
        %v694 = vadd.f32 %v692, %v693
        %v695 = vrcp.pop 8.0
        %v696 = vmul.f32 %v694, %v695
        %v697 = vsub.f32 %v686, %v696
        %v698 = vmul.f32 %v697, %v697
        %v699 = vrot.slane %v698, 4
        %v700 = vadd.f32 %v698, %v699
        %v701 = vrot.slane %v700, 2
        %v702 = vadd.f32 %v700, %v701
        %v703 = vrot.slane %v702, 1
        %v704 = vadd.f32 %v702, %v703
        %v705 = vmul.f32 %v704, %v695
        %v706 = vadd.f32 %v705, 1e-05
        %v707 = vrsqrt.pop %v706
        %v708 = vmul.f32 %v511, %v707
        %v709 = vlaneseq
        %v710 = vshrl.u32 %v709, 7
        %v711 = vsub.s32 1, %v710
        %v712 = vrot.slane %v708, %v711
        %v713 = vmul.f32 %v697, %v712
        %v714 = vlaneseq
        %v715 = vshrl.u32 %v714, 7
        %v716 = vsub.s32 2, %v715
        %v717 = vrot.slane %v511, %v716
        %v718 = vadd.f32 %v713, %v717
        %p719 = scmp.ne.s32.totalorder %s21, 1
        // Predicated region
        $region69: #{tpu_custom_call.1} parent=47 // pred_check
          %p720 = pneg %p719
        $region70: #{tpu_custom_call.1} parent=47 // pred_check_branch
          %722 = sbr.rel (%p720) target = $region72
        $region71: #{tpu_custom_call.1} parent=47 // pred_region
          %v723 = vmax.f32 %v718, 0.0
          %v724 = vpack.c.bf16 %v723, %v723
          %725 = vst [vmem:[#allocation2] sm:$0xf] %v724
        $region72: #{tpu_custom_call.1} parent=47 // pred_fallthru
          _
        %p726 = scmp.eq.s32.totalorder %s21, 1
        // Predicated region
        $region73: #{tpu_custom_call.1} parent=47 // pred_check
          %p727 = pneg %p726
        $region74: #{tpu_custom_call.1} parent=47 // pred_check_branch
          %729 = sbr.rel (%p727) target = $region76
        $region75: #{tpu_custom_call.1} parent=47 // pred_region
          %730 = vst [vmem:[#allocation10] sm:$0xff] %v718
        $region76: #{tpu_custom_call.1} parent=47 // pred_fallthru
          _
        // Predicated region
        $region77: #{tpu_custom_call.1} parent=47 // pred_check
          %p731 = pneg %p201
        $region78: #{tpu_custom_call.1} parent=47 // pred_check_branch
          %733 = sbr.rel (%p731) target = $region80
        $region79: #{tpu_custom_call.1} parent=47 // pred_region
          %s735 = ssub.s32 128, 128
          %736 = vsyncadd [#allocation5], %s735
          %s738 = sshll.u32 [#allocation10], 4
          %s739 = int_to_ptr.vmem [resolvable:$true] %s738
          %741 = dma.vmem_to_hbm [thread:$0]  %s739, 128, %s7, [#allocation5]
        $region80: #{tpu_custom_call.1} parent=47 // pred_fallthru
          _
        // Predicated region
        $region81: #{tpu_custom_call.1} parent=47 // pred_check
          %p742 = pneg %p201
        $region82: #{tpu_custom_call.1} parent=47 // pred_check_branch
          %744 = sbr.rel (%p742) target = $region84
        $region83: #{tpu_custom_call.1} parent=47 // pred_region
          %745 = dma.done [#allocation5], 128
        $region84: #{tpu_custom_call.1} parent=47 // pred_fallthru
          _
      $region48: #{tpu_custom_call.1} parent=5 // pred_fallthru
        _
      %p746 = scmp.le.s32.totalorder 2, %s16
      // Predicated region
      $region85: #{tpu_custom_call.1} parent=5 // pred_check
        %p747 = pneg %p746
      $region86: #{tpu_custom_call.1} parent=5 // pred_check_branch
        %749 = sbr.rel (%p747) target = $region88
      $region87: #{tpu_custom_call.1} parent=5 // pred_region
        %s750 = ssub.s32 %s16, 2
      $region88: #{tpu_custom_call.1} parent=5 // pred_fallthru
        _
    $region6: #{tpu_custom_call.1} parent=1 // loop_footer
      %s20 = sadd.s32 1, %s16
    $region7: #{tpu_custom_call.1} parent=1 // loop_footer_branch
      %15 = sbr.rel target = $region3
    $region8: #{tpu_custom_call.1} parent=1 // loop_exit
      _
    %751 = vsyncpa [#allocation4], 1
    %s752 = scalar_lea.sflag [#allocation4], 1
    %753 = vsyncpa %s752, 1
    %754 = vsyncpa [#allocation7], 1
    %755 = vsyncpa [#allocation5], 1
    %s756 = scalar_lea.sflag [#allocation5], 1
    %757 = vsyncpa %s756, 1

</llo_original>
